<compile_context>
chip_gen: v7x
topology: tpu7x:2x2x1
jax: 0.10.0
libtpu: 0.0.40
codegen_flags: <defaults>
</compile_context>

<pallas_src>
import jax
import jax.numpy as jnp
from jax.experimental import pallas as pl
from jax.experimental.pallas import tpu as pltpu


def _round_up(n, m):
    return (n + m - 1) // m * m


def _cdiv(a, b):
    return -(-a // b)


_INV_SQRT2 = 0.7071067811865476


def _gelu_exact(x):
    # PyTorch nn.GELU() default is the exact (erf) formulation.
    return 0.5 * x * (1.0 + jax.lax.erf(x * _INV_SQRT2))


def _vmem_capacity_bytes():
    """Generation-aware VMEM capacity (v5e/v6e ~128 MiB, v7x ~64 MiB/TC)."""
    try:
        info = pltpu.get_tpu_info()
        cap = getattr(info, "vmem_capacity_bytes", None)
        if cap:
            return int(cap)
    except Exception:
        pass
    return 64 * 1024 * 1024  # conservative fallback (v7x per-TensorCore)


def _odefunc_kernel(x_ref, w1_ref, b1_ref, w2_ref, b2_ref, w3_ref, b3_ref, o_ref):
    # Matmul inputs in the weights' dtype (f32 by default, bf16 if the user
    # opted in at prepare_params time); accumulation always f32; bias-add and
    # GELU always f32.
    mm_dtype = w1_ref.dtype
    x = x_ref[...]

    h = jnp.dot(x.astype(mm_dtype), w1_ref[...], preferred_element_type=jnp.float32)
    h = _gelu_exact(h + b1_ref[...])

    h = jnp.dot(h.astype(mm_dtype), w2_ref[...], preferred_element_type=jnp.float32)
    h = _gelu_exact(h + b2_ref[...])

    h = jnp.dot(h.astype(mm_dtype), w3_ref[...], preferred_element_type=jnp.float32)
    h = h + b3_ref[...]

    o_ref[...] = h.astype(o_ref.dtype)


def prepare_params(params, *, use_bf16_matmul=False):
    """One-time parameter prep (hoisted OUT of the ODE-solve hot path).

    params: PyTorch-Linear-style dict: w1/w2/w3 as [out, in], b1/b2/b3 as [out].
    Returns padded kernel-layout params: w* as [hid_p, hid_p] (stored [in, out]),
    b* as [1, hid_p] float32.  Zero padding is exact: padded lanes stay 0
    through the matmuls and GELU, so the valid slice is unchanged.
    """
    hid = params["w1"].shape[0]
    hid_p = _round_up(max(hid, 128), 128)
    w_dtype = jnp.bfloat16 if use_bf16_matmul else params["w1"].dtype

    def pad_w(w):
        w = jnp.asarray(w).T  # [out, in] -> [in, out]
        wp = jnp.zeros((hid_p, hid_p), w.dtype).at[:hid, :hid].set(w)
        return wp.astype(w_dtype)

    def pad_b(b):
        b = jnp.asarray(b, jnp.float32).reshape(1, -1)
        return jnp.zeros((1, hid_p), jnp.float32).at[:, :hid].set(b)

    return {
        "w1": pad_w(params["w1"]), "b1": pad_b(params["b1"]),
        "w2": pad_w(params["w2"]), "b2": pad_b(params["b2"]),
        "w3": pad_w(params["w3"]), "b3": pad_b(params["b3"]),
    }


def odefunc_forward(t, x, prepared, *, tm_max=None):
    """Pallas implementation of ODEFunc.forward(t, x).

    x: jnp array of shape [..., hid_dim]; prepared: output of prepare_params.
    t is ignored, matching the PyTorch module.
    """
    del t
    hid = x.shape[-1]
    w1 = prepared["w1"]
    hid_p = w1.shape[0]

    orig_shape = x.shape
    x2d = x.reshape(-1, hid)
    rows = x2d.shape[0]
    itemsize = jnp.dtype(x.dtype).itemsize
    w_itemsize = jnp.dtype(w1.dtype).itemsize

    # Row-tile regime: smaller tiles when hid is huge (bounds the f32 h
    # intermediates' VMEM scratch), bigger tiles when hid is small (amortize
    # the ~0.35us/step grid overhead).
    if tm_max is None:
        if hid_p >= 2048:
            tm_max = 256
        elif hid_p <= 256:
            tm_max = 1024
        else:
            tm_max = 512

    rows8 = _round_up(rows, 8)
    n_tiles = _cdiv(rows8, tm_max)
    if rows8 >= 16:
        n_tiles = max(n_tiles, 2)  # give both v7x TensorCores work
    tm = _round_up(_cdiv(rows8, n_tiles), 8)  # balanced tiles -> bounded row padding
    rows_p = _round_up(rows8, tm)
    grid_rows = rows_p // tm

    # Only copy-pad x when actually needed.
    needs_pad = (rows_p != rows) or (hid_p != hid)
    if needs_pad:
        x_in = jnp.zeros((rows_p, hid_p), x.dtype).at[:rows, :hid].set(x2d)
    else:
        x_in = x2d

    # VMEM budget computed from the actual footprint (upper bound assumes the
    # double-buffered-weights fallback), capped generation-aware.
    w_bytes = 3 * hid_p * hid_p * w_itemsize
    b_bytes = 3 * hid_p * 4
    io_bytes = 2 * (2 * tm * hid_p * itemsize)   # x + out, double-buffered
    h_bytes = 3 * tm * hid_p * 4                 # f32 intermediates between matmuls
    vmem_needed = 2 * w_bytes + b_bytes + io_bytes + h_bytes + (4 << 20)
    budget = min(int(_vmem_capacity_bytes() * 0.85), 100 * 1024 * 1024)
    vmem_limit = int(min(max(vmem_needed, 32 * 1024 * 1024), budget))
    # TODO(synk): if vmem_needed > budget (very large hid on v7x), tile the
    # weight output dim on a second grid axis (per-layer kernels) instead of
    # keeping all three weight matrices resident.

    flops = 3 * 2 * rows_p * hid_p * hid_p
    bytes_accessed = (2 * rows_p * hid_p * itemsize
                      + 3 * hid_p * hid_p * w_itemsize
                      + 3 * hid_p * 4)

    def _call(single_buffer_weights):
        resident_kwargs = {}
        if single_buffer_weights:
            # Grid-invariant weights/biases: one buffer is enough.
            resident_kwargs = dict(pipeline_mode=pl.Buffered(1))
        x_spec = pl.BlockSpec((tm, hid_p), lambda i: (i, 0))
        w_spec = pl.BlockSpec((hid_p, hid_p), lambda i: (0, 0), **resident_kwargs)
        b_spec = pl.BlockSpec((1, hid_p), lambda i: (0, 0), **resident_kwargs)
        return pl.pallas_call(
            _odefunc_kernel,
            out_shape=jax.ShapeDtypeStruct((rows_p, hid_p), x.dtype),
            grid=(grid_rows,),
            in_specs=[
                x_spec,           # x tile
                w_spec, b_spec,   # layer 1
                w_spec, b_spec,   # layer 2
                w_spec, b_spec,   # layer 3
            ],
            out_specs=pl.BlockSpec((tm, hid_p), lambda i: (i, 0)),
            compiler_params=pltpu.CompilerParams(
                dimension_semantics=("parallel",),
                vmem_limit_bytes=vmem_limit,
            ),
            cost_estimate=pl.CostEstimate(
                flops=flops,
                transcendentals=2 * rows_p * hid_p,
                bytes_accessed=bytes_accessed,
            ),
        )(x_in, prepared["w1"], prepared["b1"], prepared["w2"], prepared["b2"],
          prepared["w3"], prepared["b3"])

    try:
        out_p = _call(True)
    except Exception:
        # Fallback for JAX builds without BlockSpec pipeline_mode support:
        # default double-buffered weights (correct, just more VMEM).
        out_p = _call(False)

    if needs_pad:
        out_p = out_p[:rows, :hid]
    return out_p.reshape(orig_shape)


def init_params(key, hid_dim, dtype=jnp.float32):
    """Synthetic PyTorch-Linear-style parameters: W [out, in], b [out]."""
    keys = jax.random.split(key, 6)
    scale = 1.0 / (hid_dim ** 0.5)

    def lin(kw, kb):
        w = jax.random.uniform(kw, (hid_dim, hid_dim), dtype, -scale, scale)
        b = jax.random.uniform(kb, (hid_dim,), dtype, -scale, scale)
        return w, b

    w1, b1 = lin(keys[0], keys[1])
    w2, b2 = lin(keys[2], keys[3])
    w3, b3 = lin(keys[4], keys[5])
    return {"w1": w1, "b1": b1, "w2": w2, "b2": b2, "w3": w3, "b3": b3}


def odefunc_reference(t, x, params):
    """Pure-JAX reference (PyTorch-layout params) for the correctness check."""
    del t
    h = x @ params["w1"].T + params["b1"]
    h = jax.nn.gelu(h, approximate=False)
    h = h @ params["w2"].T + params["b2"]
    h = jax.nn.gelu(h, approximate=False)
    h = h @ params["w3"].T + params["b3"]
    return h


if __name__ == "__main__":
    hid_dim = 32
    batch, seq = 2, 8  # x: [batch, seq, hid_dim]

    key = jax.random.PRNGKey(0)
    k_param, k_x = jax.random.split(key)

    params = init_params(k_param, hid_dim)
    # One-time parameter prep, hoisted out of the (simulated) ODE-solve loop.
    prepared = prepare_params(params, use_bf16_matmul=False)

    x = jax.random.normal(k_x, (batch, seq, hid_dim), jnp.float32)
    t = jnp.array(0.0, jnp.float32)  # ignored, as in the PyTorch module

    out = jax.block_until_ready(odefunc_forward(t, x, prepared))
    ref = odefunc_reference(t, x, params)

    assert out.shape == x.shape
    assert jnp.allclose(out, ref, atol=1e-5, rtol=1e-5)

    print("KERNEL_OK")
</pallas_src>

<mosaic_0001>
module attributes {stable_mosaic.version = 11 : i64} {
  func.func @_odefunc_kernel(%arg0: i32, %arg1: memref<8x128xf32, #tpu.memory_space<vmem>>, %arg2: memref<128x128xf32, #tpu.memory_space<vmem>>, %arg3: memref<1x128xf32, #tpu.memory_space<vmem>>, %arg4: memref<128x128xf32, #tpu.memory_space<vmem>>, %arg5: memref<1x128xf32, #tpu.memory_space<vmem>>, %arg6: memref<128x128xf32, #tpu.memory_space<vmem>>, %arg7: memref<1x128xf32, #tpu.memory_space<vmem>>, %arg8: memref<8x128xf32, #tpu.memory_space<vmem>>) attributes {dimension_semantics = [#tpu.dimension_semantics<parallel>], iteration_bounds = array<i64: 2>, scalar_prefetch = 0 : i64, scratch_operands = 0 : i64, tpu.core_type = #tpu.core_type<tc>, window_params = [{transform_indices = @transform_0, window_bounds = array<i64: 8, 128>}, {pipeline_mode = #tpu.pipeline_mode<synchronous>, transform_indices = @transform_1, window_bounds = array<i64: 128, 128>}, {pipeline_mode = #tpu.pipeline_mode<synchronous>, transform_indices = @transform_2, window_bounds = array<i64: 1, 128>}, {pipeline_mode = #tpu.pipeline_mode<synchronous>, transform_indices = @transform_3, window_bounds = array<i64: 128, 128>}, {pipeline_mode = #tpu.pipeline_mode<synchronous>, transform_indices = @transform_4, window_bounds = array<i64: 1, 128>}, {pipeline_mode = #tpu.pipeline_mode<synchronous>, transform_indices = @transform_5, window_bounds = array<i64: 128, 128>}, {pipeline_mode = #tpu.pipeline_mode<synchronous>, transform_indices = @transform_6, window_bounds = array<i64: 1, 128>}, {transform_indices = @transform_7, window_bounds = array<i64: 8, 128>}]} {
    %c0 = arith.constant 0 : index
    %c0_0 = arith.constant 0 : index
    %0 = vector.load %arg1[%c0, %c0_0] : memref<8x128xf32, #tpu.memory_space<vmem>>, vector<8x128xf32>
    %c0_1 = arith.constant 0 : index
    %c0_2 = arith.constant 0 : index
    %1 = vector.load %arg2[%c0_1, %c0_2] : memref<128x128xf32, #tpu.memory_space<vmem>>, vector<128x128xf32>
    %cst = arith.constant dense<0.000000e+00> : vector<8x128xf32>
    %2 = tpu.matmul %0, %1, %cst {dimension_numbers = #tpu.dot_dimension_numbers<[1], [0], [0], [1], [0, 0, 1, 1], [], []>} : vector<8x128xf32>, vector<128x128xf32>, vector<8x128xf32> -> vector<8x128xf32>
    %c0_3 = arith.constant 0 : index
    %c0_4 = arith.constant 0 : index
    %3 = vector.load %arg3[%c0_3, %c0_4] : memref<1x128xf32, #tpu.memory_space<vmem>>, vector<1x128xf32>
    %4 = vector.broadcast %3 : vector<1x128xf32> to vector<8x128xf32>
    %5 = arith.addf %2, %4 : vector<8x128xf32>
    %cst_5 = arith.constant 5.000000e-01 : f32
    %6 = vector.broadcast %cst_5 : f32 to vector<8x128xf32>
    %7 = arith.mulf %6, %5 : vector<8x128xf32>
    %cst_6 = arith.constant 0.707106769 : f32
    %8 = vector.broadcast %cst_6 : f32 to vector<8x128xf32>
    %9 = arith.mulf %5, %8 : vector<8x128xf32>
    %10 = math.erf %9 : vector<8x128xf32>
    %cst_7 = arith.constant 1.000000e+00 : f32
    %11 = vector.broadcast %cst_7 : f32 to vector<8x128xf32>
    %12 = arith.addf %11, %10 : vector<8x128xf32>
    %13 = arith.mulf %7, %12 : vector<8x128xf32>
    %c0_8 = arith.constant 0 : index
    %c0_9 = arith.constant 0 : index
    %14 = vector.load %arg4[%c0_8, %c0_9] : memref<128x128xf32, #tpu.memory_space<vmem>>, vector<128x128xf32>
    %cst_10 = arith.constant dense<0.000000e+00> : vector<8x128xf32>
    %15 = tpu.matmul %13, %14, %cst_10 {dimension_numbers = #tpu.dot_dimension_numbers<[1], [0], [0], [1], [0, 0, 1, 1], [], []>} : vector<8x128xf32>, vector<128x128xf32>, vector<8x128xf32> -> vector<8x128xf32>
    %c0_11 = arith.constant 0 : index
    %c0_12 = arith.constant 0 : index
    %16 = vector.load %arg5[%c0_11, %c0_12] : memref<1x128xf32, #tpu.memory_space<vmem>>, vector<1x128xf32>
    %17 = vector.broadcast %16 : vector<1x128xf32> to vector<8x128xf32>
    %18 = arith.addf %15, %17 : vector<8x128xf32>
    %cst_13 = arith.constant 5.000000e-01 : f32
    %19 = vector.broadcast %cst_13 : f32 to vector<8x128xf32>
    %20 = arith.mulf %19, %18 : vector<8x128xf32>
    %cst_14 = arith.constant 0.707106769 : f32
    %21 = vector.broadcast %cst_14 : f32 to vector<8x128xf32>
    %22 = arith.mulf %18, %21 : vector<8x128xf32>
    %23 = math.erf %22 : vector<8x128xf32>
    %cst_15 = arith.constant 1.000000e+00 : f32
    %24 = vector.broadcast %cst_15 : f32 to vector<8x128xf32>
    %25 = arith.addf %24, %23 : vector<8x128xf32>
    %26 = arith.mulf %20, %25 : vector<8x128xf32>
    %c0_16 = arith.constant 0 : index
    %c0_17 = arith.constant 0 : index
    %27 = vector.load %arg6[%c0_16, %c0_17] : memref<128x128xf32, #tpu.memory_space<vmem>>, vector<128x128xf32>
    %cst_18 = arith.constant dense<0.000000e+00> : vector<8x128xf32>
    %28 = tpu.matmul %26, %27, %cst_18 {dimension_numbers = #tpu.dot_dimension_numbers<[1], [0], [0], [1], [0, 0, 1, 1], [], []>} : vector<8x128xf32>, vector<128x128xf32>, vector<8x128xf32> -> vector<8x128xf32>
    %c0_19 = arith.constant 0 : index
    %c0_20 = arith.constant 0 : index
    %29 = vector.load %arg7[%c0_19, %c0_20] : memref<1x128xf32, #tpu.memory_space<vmem>>, vector<1x128xf32>
    %30 = vector.broadcast %29 : vector<1x128xf32> to vector<8x128xf32>
    %31 = arith.addf %28, %30 : vector<8x128xf32>
    %c0_21 = arith.constant 0 : index
    %c0_22 = arith.constant 0 : index
    %32 = vector.load %arg8[%c0_21, %c0_22] : memref<8x128xf32, #tpu.memory_space<vmem>>, vector<8x128xf32>
    tpu.vector_store %arg8[%c0_21, %c0_22], %31 {strides = array<i32>} : memref<8x128xf32, #tpu.memory_space<vmem>>, vector<8x128xf32>,
    return
  }
  func.func @transform_0(%arg0: i32) -> (i32, i32) {
    %c0_i32 = arith.constant 0 : i32
    %c0_i32_0 = arith.constant 0 : i32
    return %arg0, %c0_i32 : i32, i32
  }
  func.func @transform_1(%arg0: i32) -> (i32, i32) {
    %c0_i32 = arith.constant 0 : i32
    %c0_i32_0 = arith.constant 0 : i32
    %c0_i32_1 = arith.constant 0 : i32
    return %c0_i32, %c0_i32_0 : i32, i32
  }
  func.func @transform_2(%arg0: i32) -> (i32, i32) {
    %c0_i32 = arith.constant 0 : i32
    %c0_i32_0 = arith.constant 0 : i32
    %c0_i32_1 = arith.constant 0 : i32
    return %c0_i32, %c0_i32_0 : i32, i32
  }
  func.func @transform_3(%arg0: i32) -> (i32, i32) {
    %c0_i32 = arith.constant 0 : i32
    %c0_i32_0 = arith.constant 0 : i32
    %c0_i32_1 = arith.constant 0 : i32
    return %c0_i32, %c0_i32_0 : i32, i32
  }
  func.func @transform_4(%arg0: i32) -> (i32, i32) {
    %c0_i32 = arith.constant 0 : i32
    %c0_i32_0 = arith.constant 0 : i32
    %c0_i32_1 = arith.constant 0 : i32
    return %c0_i32, %c0_i32_0 : i32, i32
  }
  func.func @transform_5(%arg0: i32) -> (i32, i32) {
    %c0_i32 = arith.constant 0 : i32
    %c0_i32_0 = arith.constant 0 : i32
    %c0_i32_1 = arith.constant 0 : i32
    return %c0_i32, %c0_i32_0 : i32, i32
  }
  func.func @transform_6(%arg0: i32) -> (i32, i32) {
    %c0_i32 = arith.constant 0 : i32
    %c0_i32_0 = arith.constant 0 : i32
    %c0_i32_1 = arith.constant 0 : i32
    return %c0_i32, %c0_i32_0 : i32, i32
  }
  func.func @transform_7(%arg0: i32) -> (i32, i32) {
    %c0_i32 = arith.constant 0 : i32
    %c0_i32_0 = arith.constant 0 : i32
    return %arg0, %c0_i32 : i32, i32
  }
}

module attributes {stable_mosaic.version = 11 : i64} {
  func.func @_odefunc_kernel(%arg0: i32, %arg1: memref<8x128xf32, #tpu.memory_space<vmem>>, %arg2: memref<128x128xf32, #tpu.memory_space<vmem>>, %arg3: memref<1x128xf32, #tpu.memory_space<vmem>>, %arg4: memref<128x128xf32, #tpu.memory_space<vmem>>, %arg5: memref<1x128xf32, #tpu.memory_space<vmem>>, %arg6: memref<128x128xf32, #tpu.memory_space<vmem>>, %arg7: memref<1x128xf32, #tpu.memory_space<vmem>>, %arg8: memref<8x128xf32, #tpu.memory_space<vmem>>) attributes {dimension_semantics = [#tpu.dimension_semantics<parallel>], iteration_bounds = array<i64: 2>, scalar_prefetch = 0 : i64, scratch_operands = 0 : i64, tpu.core_type = #tpu.core_type<tc>, window_params = [{transform_indices = @transform_0, window_bounds = array<i64: 8, 128>}, {pipeline_mode = #tpu.pipeline_mode<synchronous>, transform_indices = @transform_1, window_bounds = array<i64: 128, 128>}, {pipeline_mode = #tpu.pipeline_mode<synchronous>, transform_indices = @transform_2, window_bounds = array<i64: 1, 128>}, {pipeline_mode = #tpu.pipeline_mode<synchronous>, transform_indices = @transform_3, window_bounds = array<i64: 128, 128>}, {pipeline_mode = #tpu.pipeline_mode<synchronous>, transform_indices = @transform_4, window_bounds = array<i64: 1, 128>}, {pipeline_mode = #tpu.pipeline_mode<synchronous>, transform_indices = @transform_5, window_bounds = array<i64: 128, 128>}, {pipeline_mode = #tpu.pipeline_mode<synchronous>, transform_indices = @transform_6, window_bounds = array<i64: 1, 128>}, {transform_indices = @transform_7, window_bounds = array<i64: 8, 128>}]} {
    %c0 = arith.constant 0 : index
    %c0_0 = arith.constant 0 : index
    %0 = vector.load %arg1[%c0, %c0_0] : memref<8x128xf32, #tpu.memory_space<vmem>>, vector<8x128xf32>
    %c0_1 = arith.constant 0 : index
    %c0_2 = arith.constant 0 : index
    %1 = vector.load %arg2[%c0_1, %c0_2] : memref<128x128xf32, #tpu.memory_space<vmem>>, vector<128x128xf32>
    %cst = arith.constant dense<0.000000e+00> : vector<8x128xf32>
    %2 = tpu.matmul %0, %1, %cst {dimension_numbers = #tpu.dot_dimension_numbers<[1], [0], [0], [1], [0, 0, 1, 1], [], []>} : vector<8x128xf32>, vector<128x128xf32>, vector<8x128xf32> -> vector<8x128xf32>
    %c0_3 = arith.constant 0 : index
    %c0_4 = arith.constant 0 : index
    %3 = vector.load %arg3[%c0_3, %c0_4] : memref<1x128xf32, #tpu.memory_space<vmem>>, vector<1x128xf32>
    %4 = vector.broadcast %3 : vector<1x128xf32> to vector<8x128xf32>
    %5 = arith.addf %2, %4 : vector<8x128xf32>
    %cst_5 = arith.constant 5.000000e-01 : f32
    %6 = vector.broadcast %cst_5 : f32 to vector<8x128xf32>
    %7 = arith.mulf %6, %5 : vector<8x128xf32>
    %cst_6 = arith.constant 0.707106769 : f32
    %8 = vector.broadcast %cst_6 : f32 to vector<8x128xf32>
    %9 = arith.mulf %5, %8 : vector<8x128xf32>
    %10 = math.erf %9 : vector<8x128xf32>
    %cst_7 = arith.constant 1.000000e+00 : f32
    %11 = vector.broadcast %cst_7 : f32 to vector<8x128xf32>
    %12 = arith.addf %11, %10 : vector<8x128xf32>
    %13 = arith.mulf %7, %12 : vector<8x128xf32>
    %c0_8 = arith.constant 0 : index
    %c0_9 = arith.constant 0 : index
    %14 = vector.load %arg4[%c0_8, %c0_9] : memref<128x128xf32, #tpu.memory_space<vmem>>, vector<128x128xf32>
    %cst_10 = arith.constant dense<0.000000e+00> : vector<8x128xf32>
    %15 = tpu.matmul %13, %14, %cst_10 {dimension_numbers = #tpu.dot_dimension_numbers<[1], [0], [0], [1], [0, 0, 1, 1], [], []>} : vector<8x128xf32>, vector<128x128xf32>, vector<8x128xf32> -> vector<8x128xf32>
    %c0_11 = arith.constant 0 : index
    %c0_12 = arith.constant 0 : index
    %16 = vector.load %arg5[%c0_11, %c0_12] : memref<1x128xf32, #tpu.memory_space<vmem>>, vector<1x128xf32>
    %17 = vector.broadcast %16 : vector<1x128xf32> to vector<8x128xf32>
    %18 = arith.addf %15, %17 : vector<8x128xf32>
    %cst_13 = arith.constant 5.000000e-01 : f32
    %19 = vector.broadcast %cst_13 : f32 to vector<8x128xf32>
    %20 = arith.mulf %19, %18 : vector<8x128xf32>
    %cst_14 = arith.constant 0.707106769 : f32
    %21 = vector.broadcast %cst_14 : f32 to vector<8x128xf32>
    %22 = arith.mulf %18, %21 : vector<8x128xf32>
    %23 = math.erf %22 : vector<8x128xf32>
    %cst_15 = arith.constant 1.000000e+00 : f32
    %24 = vector.broadcast %cst_15 : f32 to vector<8x128xf32>
    %25 = arith.addf %24, %23 : vector<8x128xf32>
    %26 = arith.mulf %20, %25 : vector<8x128xf32>
    %c0_16 = arith.constant 0 : index
    %c0_17 = arith.constant 0 : index
    %27 = vector.load %arg6[%c0_16, %c0_17] : memref<128x128xf32, #tpu.memory_space<vmem>>, vector<128x128xf32>
    %cst_18 = arith.constant dense<0.000000e+00> : vector<8x128xf32>
    %28 = tpu.matmul %26, %27, %cst_18 {dimension_numbers = #tpu.dot_dimension_numbers<[1], [0], [0], [1], [0, 0, 1, 1], [], []>} : vector<8x128xf32>, vector<128x128xf32>, vector<8x128xf32> -> vector<8x128xf32>
    %c0_19 = arith.constant 0 : index
    %c0_20 = arith.constant 0 : index
    %29 = vector.load %arg7[%c0_19, %c0_20] : memref<1x128xf32, #tpu.memory_space<vmem>>, vector<1x128xf32>
    %30 = vector.broadcast %29 : vector<1x128xf32> to vector<8x128xf32>
    %31 = arith.addf %28, %30 : vector<8x128xf32>
    %c0_21 = arith.constant 0 : index
    %c0_22 = arith.constant 0 : index
    %32 = vector.load %arg8[%c0_21, %c0_22] : memref<8x128xf32, #tpu.memory_space<vmem>>, vector<8x128xf32>
    tpu.vector_store %arg8[%c0_21, %c0_22], %31 {strides = array<i32>} : memref<8x128xf32, #tpu.memory_space<vmem>>, vector<8x128xf32>,
    return
  }
  func.func @transform_0(%arg0: i32) -> (i32, i32) {
    %c0_i32 = arith.constant 0 : i32
    %c0_i32_0 = arith.constant 0 : i32
    return %arg0, %c0_i32 : i32, i32
  }
  func.func @transform_1(%arg0: i32) -> (i32, i32) {
    %c0_i32 = arith.constant 0 : i32
    %c0_i32_0 = arith.constant 0 : i32
    %c0_i32_1 = arith.constant 0 : i32
    return %c0_i32, %c0_i32_0 : i32, i32
  }
  func.func @transform_2(%arg0: i32) -> (i32, i32) {
    %c0_i32 = arith.constant 0 : i32
    %c0_i32_0 = arith.constant 0 : i32
    %c0_i32_1 = arith.constant 0 : i32
    return %c0_i32, %c0_i32_0 : i32, i32
  }
  func.func @transform_3(%arg0: i32) -> (i32, i32) {
    %c0_i32 = arith.constant 0 : i32
    %c0_i32_0 = arith.constant 0 : i32
    %c0_i32_1 = arith.constant 0 : i32
    return %c0_i32, %c0_i32_0 : i32, i32
  }
  func.func @transform_4(%arg0: i32) -> (i32, i32) {
    %c0_i32 = arith.constant 0 : i32
    %c0_i32_0 = arith.constant 0 : i32
    %c0_i32_1 = arith.constant 0 : i32
    return %c0_i32, %c0_i32_0 : i32, i32
  }
  func.func @transform_5(%arg0: i32) -> (i32, i32) {
    %c0_i32 = arith.constant 0 : i32
    %c0_i32_0 = arith.constant 0 : i32
    %c0_i32_1 = arith.constant 0 : i32
    return %c0_i32, %c0_i32_0 : i32, i32
  }
  func.func @transform_6(%arg0: i32) -> (i32, i32) {
    %c0_i32 = arith.constant 0 : i32
    %c0_i32_0 = arith.constant 0 : i32
    %c0_i32_1 = arith.constant 0 : i32
    return %c0_i32, %c0_i32_0 : i32, i32
  }
  func.func @transform_7(%arg0: i32) -> (i32, i32) {
    %c0_i32 = arith.constant 0 : i32
    %c0_i32_0 = arith.constant 0 : i32
    return %arg0, %c0_i32 : i32, i32
  }
}

</mosaic_0001>

<llo_original>
// kernel: tpu_custom_call.1
$region0: #{tpu_custom_call.1}
  #allocation0 [shape = 'u32[]', space=smem, size = 0x4, offset = 0x4, fixed_abs, tag = 'smem constant byte address 0x4 - core index']
  #allocation1 [shape = 'u32[144,128]{1,0:T(1,128)}', space=vmem, size = 0x12000, scoped, tag = 'internal scratch']
  %s0 = inlined_call_operand.hbm [shape: f32[16,128], index: 0, kind: input, shape index: {}]
  %s1 = inlined_call_operand.hbm [shape: f32[128,128], index: 1, kind: input, shape index: {}]
  %s2 = inlined_call_operand.vmem [shape: f32[1,128], index: 2, kind: input, shape index: {}]
  %s3 = inlined_call_operand.hbm [shape: f32[128,128], index: 3, kind: input, shape index: {}]
  %s4 = inlined_call_operand.vmem [shape: f32[1,128], index: 4, kind: input, shape index: {}]
  %s5 = inlined_call_operand.hbm [shape: f32[128,128], index: 5, kind: input, shape index: {}]
  %s6 = inlined_call_operand.vmem [shape: f32[1,128], index: 6, kind: input, shape index: {}]
  %s7 = inlined_call_operand.hbm [shape: f32[16,128], index: 7, kind: output, shape index: {}]
  %s8 = sld [smem:[#allocation0]]
  $region77: #{tpu_custom_call.1} parent=0
    _
  %s10 = ssub.s32 1, %s8
  %s11 = scalar_select 0, %s10, %s8
  $region1: #{tpu_custom_call.1} parent=0
    #allocation2 [shape = 'u8[8192]{0}', space=vmem, size = 0x2000, scoped, tag = 'input window, operand 0']
    #allocation3 [shape = 's32[2]{0}', space=sflag, size = 0x8, scoped, tag = 'scoped memory for tpu_custom_call.1']
    #allocation4 [shape = 's32[2]{0}', space=sflag, size = 0x8, scoped, tag = 'scoped memory for tpu_custom_call.1']
    #allocation5 [shape = 'u8[65536]{0}', space=vmem, size = 0x10000, scoped, tag = 'input window, operand 1, single buffered']
    #allocation6 [shape = 's32[1]{0}', space=sflag, size = 0x4, scoped, tag = 'scoped memory for tpu_custom_call.1']
    #allocation7 [shape = 'u8[65536]{0}', space=vmem, size = 0x10000, scoped, tag = 'input window, operand 3, single buffered']
    #allocation8 [shape = 'u8[65536]{0}', space=vmem, size = 0x10000, scoped, tag = 'input window, operand 5, single buffered']
    #allocation9 [shape = 's32[1]{0}', space=sflag, size = 0x4, scoped, tag = 'scoped memory for tpu_custom_call.1']
    #allocation10 [shape = 'u8[8192]{0}', space=vmem, size = 0x2000, scoped, tag = 'output window, operand 0']
    %12 = vsyncpa [#allocation3], 0
    %s13 = scalar_lea.sflag [#allocation3], 1
    %14 = vsyncpa %s13, 0
    %15 = vsyncpa [#allocation6], 0
    %16 = vsyncpa [#allocation9], 0
    %17 = vsyncpa [#allocation4], 0
    %s18 = scalar_lea.sflag [#allocation4], 1
    %19 = vsyncpa %s18, 0
    loop: start=0, step=1, limit=4
    $region2: #{tpu_custom_call.1} parent=1 // loop_pre_header
      _
    $region3: #{tpu_custom_call.1} parent=1 // loop_header
      %s21 = sphi 0, %s25
      %p22 = scmp.ge.s32.totalorder %s21, 4
      %s31 = sphi 0, %s33
      %s34 = sphi 0, %s31
      %s35 = sphi 0, %s34
      %s51 = sphi 0, %s35
      %s55 = sphi 0, %s55
      %s57 = sphi 0, %s55
      %s58 = sphi 0, %s57
      %s72 = sphi 0, %s58
      %s76 = sphi 0, %s76
      %s78 = sphi 0, %s76
      %s79 = sphi 0, %s78
      %s93 = sphi 0, %s79
      %s97 = sphi 0, %s97
      %s99 = sphi 0, %s97
      %s100 = sphi 0, %s99
      %s114 = sphi 0, %s100
      %s118 = sphi 0, %s118
      %s120 = sphi 0, %s118
      %s121 = sphi 0, %s120
      %s135 = sphi 0, %s121
      %s139 = sphi 0, %s139
      %s141 = sphi 0, %s139
      %s142 = sphi 0, %s141
      %s156 = sphi 0, %s142
      %s160 = sphi 0, %s160
      %s162 = sphi 0, %s160
      %s163 = sphi 0, %s162
      %s177 = sphi 0, %s163
      %s183 = sphi 0, %s185
      %s186 = sphi 0, %s183
      %s187 = sphi 0, %s186
      %s203 = sphi 0, %s187
    $region4: #{tpu_custom_call.1} parent=1 // loop_header_branch
      %24 = sbr.rel (%p22) target = $region8
    $region5: #{tpu_custom_call.1} parent=1 // loop_body
      %s26 = ssub.s32 %s21, 1
      %s27 = ssub.s32 %s21, 2
      %s28 = sadd.s32 %s21, 1
      %s29 = ssub.s32 %s21, %s28
      %p30 = scmp.eq.s32.totalorder %s29, 0
      %s32 = sadd.s32 %s31, 1
      %s33 = scalar_select %p30, %s31, %s32
      %p36 = pneg %p30
      %p37 = scmp.eq.s32.totalorder %s21, 1
      %p38 = por %p36, %p37
      %p39 = scmp.ne.s32.totalorder %s31, %s34
      %p40 = scmp.eq.s32.totalorder %s21, 0
      %p41 = por %p39, %p40
      %p42 = scmp.ne.s32.totalorder %s31, %s34
      %p43 = scmp.eq.s32.totalorder %s26, 1
      %p44 = por %p42, %p43
      %p45 = scmp.ne.s32.totalorder %s34, %s35
      %p46 = scmp.eq.s32.totalorder %s26, 0
      %p47 = por %p45, %p46
      %p48 = scmp.ne.s32.totalorder %s34, %s35
      %p49 = scmp.eq.s32.totalorder %s27, 1
      %p50 = por %p48, %p49
      %p52 = scmp.ne.s32.totalorder %s35, %s51
      %p53 = scmp.eq.s32.totalorder %s27, 0
      %p54 = por %p52, %p53
      %s56 = sadd.s32 %s55, 1
      %p59 = scmp.eq.s32.totalorder %s21, 1
      %p60 = scmp.ne.s32.totalorder %s55, %s57
      %p61 = scmp.eq.s32.totalorder %s21, 0
      %p62 = por %p60, %p61
      %p63 = scmp.ne.s32.totalorder %s55, %s57
      %p64 = scmp.eq.s32.totalorder %s26, 1
      %p65 = por %p63, %p64
      %p66 = scmp.ne.s32.totalorder %s57, %s58
      %p67 = scmp.eq.s32.totalorder %s26, 0
      %p68 = por %p66, %p67
      %p69 = scmp.ne.s32.totalorder %s57, %s58
      %p70 = scmp.eq.s32.totalorder %s27, 1
      %p71 = por %p69, %p70
      %p73 = scmp.ne.s32.totalorder %s58, %s72
      %p74 = scmp.eq.s32.totalorder %s27, 0
      %p75 = por %p73, %p74
      %s77 = sadd.s32 %s76, 1
      %p80 = scmp.eq.s32.totalorder %s21, 1
      %p81 = scmp.ne.s32.totalorder %s76, %s78
      %p82 = scmp.eq.s32.totalorder %s21, 0
      %p83 = por %p81, %p82
      %p84 = scmp.ne.s32.totalorder %s76, %s78
      %p85 = scmp.eq.s32.totalorder %s26, 1
      %p86 = por %p84, %p85
      %p87 = scmp.ne.s32.totalorder %s78, %s79
      %p88 = scmp.eq.s32.totalorder %s26, 0
      %p89 = por %p87, %p88
      %p90 = scmp.ne.s32.totalorder %s78, %s79
      %p91 = scmp.eq.s32.totalorder %s27, 1
      %p92 = por %p90, %p91
      %p94 = scmp.ne.s32.totalorder %s79, %s93
      %p95 = scmp.eq.s32.totalorder %s27, 0
      %p96 = por %p94, %p95
      %s98 = sadd.s32 %s97, 1
      %p101 = scmp.eq.s32.totalorder %s21, 1
      %p102 = scmp.ne.s32.totalorder %s97, %s99
      %p103 = scmp.eq.s32.totalorder %s21, 0
      %p104 = por %p102, %p103
      %p105 = scmp.ne.s32.totalorder %s97, %s99
      %p106 = scmp.eq.s32.totalorder %s26, 1
      %p107 = por %p105, %p106
      %p108 = scmp.ne.s32.totalorder %s99, %s100
      %p109 = scmp.eq.s32.totalorder %s26, 0
      %p110 = por %p108, %p109
      %p111 = scmp.ne.s32.totalorder %s99, %s100
      %p112 = scmp.eq.s32.totalorder %s27, 1
      %p113 = por %p111, %p112
      %p115 = scmp.ne.s32.totalorder %s100, %s114
      %p116 = scmp.eq.s32.totalorder %s27, 0
      %p117 = por %p115, %p116
      %s119 = sadd.s32 %s118, 1
      %p122 = scmp.eq.s32.totalorder %s21, 1
      %p123 = scmp.ne.s32.totalorder %s118, %s120
      %p124 = scmp.eq.s32.totalorder %s21, 0
      %p125 = por %p123, %p124
      %p126 = scmp.ne.s32.totalorder %s118, %s120
      %p127 = scmp.eq.s32.totalorder %s26, 1
      %p128 = por %p126, %p127
      %p129 = scmp.ne.s32.totalorder %s120, %s121
      %p130 = scmp.eq.s32.totalorder %s26, 0
      %p131 = por %p129, %p130
      %p132 = scmp.ne.s32.totalorder %s120, %s121
      %p133 = scmp.eq.s32.totalorder %s27, 1
      %p134 = por %p132, %p133
      %p136 = scmp.ne.s32.totalorder %s121, %s135
      %p137 = scmp.eq.s32.totalorder %s27, 0
      %p138 = por %p136, %p137
      %s140 = sadd.s32 %s139, 1
      %p143 = scmp.eq.s32.totalorder %s21, 1
      %p144 = scmp.ne.s32.totalorder %s139, %s141
      %p145 = scmp.eq.s32.totalorder %s21, 0
      %p146 = por %p144, %p145
      %p147 = scmp.ne.s32.totalorder %s139, %s141
      %p148 = scmp.eq.s32.totalorder %s26, 1
      %p149 = por %p147, %p148
      %p150 = scmp.ne.s32.totalorder %s141, %s142
      %p151 = scmp.eq.s32.totalorder %s26, 0
      %p152 = por %p150, %p151
      %p153 = scmp.ne.s32.totalorder %s141, %s142
      %p154 = scmp.eq.s32.totalorder %s27, 1
      %p155 = por %p153, %p154
      %p157 = scmp.ne.s32.totalorder %s142, %s156
      %p158 = scmp.eq.s32.totalorder %s27, 0
      %p159 = por %p157, %p158
      %s161 = sadd.s32 %s160, 1
      %p164 = scmp.eq.s32.totalorder %s21, 1
      %p165 = scmp.ne.s32.totalorder %s160, %s162
      %p166 = scmp.eq.s32.totalorder %s21, 0
      %p167 = por %p165, %p166
      %p168 = scmp.ne.s32.totalorder %s160, %s162
      %p169 = scmp.eq.s32.totalorder %s26, 1
      %p170 = por %p168, %p169
      %p171 = scmp.ne.s32.totalorder %s162, %s163
      %p172 = scmp.eq.s32.totalorder %s26, 0
      %p173 = por %p171, %p172
      %p174 = scmp.ne.s32.totalorder %s162, %s163
      %p175 = scmp.eq.s32.totalorder %s27, 1
      %p176 = por %p174, %p175
      %p178 = scmp.ne.s32.totalorder %s163, %s177
      %p179 = scmp.eq.s32.totalorder %s27, 0
      %p180 = por %p178, %p179
      %s181 = ssub.s32 %s21, %s28
      %p182 = scmp.eq.s32.totalorder %s181, 0
      %s184 = sadd.s32 %s183, 1
      %s185 = scalar_select %p182, %s183, %s184
      %p188 = pneg %p182
      %p189 = scmp.eq.s32.totalorder %s21, 1
      %p190 = por %p188, %p189
      %p191 = scmp.ne.s32.totalorder %s183, %s186
      %p192 = scmp.eq.s32.totalorder %s21, 0
      %p193 = por %p191, %p192
      %p194 = scmp.ne.s32.totalorder %s183, %s186
      %p195 = scmp.eq.s32.totalorder %s26, 1
      %p196 = por %p194, %p195
      %p197 = scmp.ne.s32.totalorder %s186, %s187
      %p198 = scmp.eq.s32.totalorder %s26, 0
      %p199 = por %p197, %p198
      %p200 = scmp.ne.s32.totalorder %s186, %s187
      %p201 = scmp.eq.s32.totalorder %s27, 1
      %p202 = por %p200, %p201
      %p204 = scmp.ne.s32.totalorder %s187, %s203
      %p205 = scmp.eq.s32.totalorder %s27, 0
      %p206 = por %p204, %p205
      %p207 = scmp.le.s32.totalorder 1, %s21
      %p208 = scmp.lt.s32.totalorder %s21, 3
      %p209 = pnand %p207, %p208
      %p210 = pneg %p209
      // Predicated region
      $region9: #{tpu_custom_call.1} parent=5 // pred_check
        _
      $region10: #{tpu_custom_call.1} parent=5 // pred_check_branch
        %212 = sbr.rel (%p209) target = $region12
      $region11: #{tpu_custom_call.1} parent=5 // pred_region
        %s213 = ssub.s32 %s21, 1
        // Predicated region
        $region13: #{tpu_custom_call.1} parent=11 // pred_check
          %p214 = pneg %p68
        $region14: #{tpu_custom_call.1} parent=11 // pred_check_branch
          %216 = sbr.rel (%p214) target = $region16
        $region15: #{tpu_custom_call.1} parent=11 // pred_region
          %s218 = ssub.s32 2048, 2048
          %219 = vsyncadd [#allocation6], %s218
          %s220 = sshll.u32 [#allocation5], 4
          %s221 = int_to_ptr.vmem [resolvable:$true] %s220
          %226 = dma.hbm_to_vmem [thread:$0]  %s1, 2048, %s221, [#allocation6], 128, 128, 8
        $region16: #{tpu_custom_call.1} parent=11 // pred_fallthru
          _
        // Predicated region
        $region17: #{tpu_custom_call.1} parent=11 // pred_check
          %p227 = pneg %p89
        $region18: #{tpu_custom_call.1} parent=11 // pred_check_branch
          %229 = sbr.rel (%p227) target = $region20
        $region19: #{tpu_custom_call.1} parent=11 // pred_region
          _
        $region20: #{tpu_custom_call.1} parent=11 // pred_fallthru
          _
        // Predicated region
        $region21: #{tpu_custom_call.1} parent=11 // pred_check
          %p230 = pneg %p110
        $region22: #{tpu_custom_call.1} parent=11 // pred_check_branch
          %232 = sbr.rel (%p230) target = $region24
        $region23: #{tpu_custom_call.1} parent=11 // pred_region
          %s234 = ssub.s32 2048, 2048
          %235 = vsyncadd [#allocation6], %s234
          %s236 = sshll.u32 [#allocation7], 4
          %s237 = int_to_ptr.vmem [resolvable:$true] %s236
          %242 = dma.hbm_to_vmem [thread:$0]  %s3, 2048, %s237, [#allocation6], 128, 128, 8
        $region24: #{tpu_custom_call.1} parent=11 // pred_fallthru
          _
        // Predicated region
        $region25: #{tpu_custom_call.1} parent=11 // pred_check
          %p243 = pneg %p131
        $region26: #{tpu_custom_call.1} parent=11 // pred_check_branch
          %245 = sbr.rel (%p243) target = $region28
        $region27: #{tpu_custom_call.1} parent=11 // pred_region
          _
        $region28: #{tpu_custom_call.1} parent=11 // pred_fallthru
          _
        // Predicated region
        $region29: #{tpu_custom_call.1} parent=11 // pred_check
          %p246 = pneg %p152
        $region30: #{tpu_custom_call.1} parent=11 // pred_check_branch
          %248 = sbr.rel (%p246) target = $region32
        $region31: #{tpu_custom_call.1} parent=11 // pred_region
          %s250 = ssub.s32 2048, 2048
          %251 = vsyncadd [#allocation9], %s250
          %s252 = sshll.u32 [#allocation8], 4
          %s253 = int_to_ptr.vmem [resolvable:$true] %s252
          %258 = dma.hbm_to_vmem [thread:$0]  %s5, 2048, %s253, [#allocation9], 128, 128, 8
        $region32: #{tpu_custom_call.1} parent=11 // pred_fallthru
          _
        // Predicated region
        $region33: #{tpu_custom_call.1} parent=11 // pred_check
          %p259 = pneg %p173
        $region34: #{tpu_custom_call.1} parent=11 // pred_check_branch
          %261 = sbr.rel (%p259) target = $region36
        $region35: #{tpu_custom_call.1} parent=11 // pred_region
          _
        $region36: #{tpu_custom_call.1} parent=11 // pred_fallthru
          _
      $region12: #{tpu_custom_call.1} parent=5 // pred_fallthru
        _
      %p262 = scmp.lt.s32.totalorder %s21, 2
      // Predicated region
      $region37: #{tpu_custom_call.1} parent=5 // pred_check
        %p263 = pneg %p262
      $region38: #{tpu_custom_call.1} parent=5 // pred_check_branch
        %265 = sbr.rel (%p263) target = $region40
      $region39: #{tpu_custom_call.1} parent=5 // pred_region
        // Predicated region
        $region41: #{tpu_custom_call.1} parent=39 // pred_check
          %p266 = pneg %p41
        $region42: #{tpu_custom_call.1} parent=39 // pred_check_branch
          %268 = sbr.rel (%p266) target = $region44
        $region43: #{tpu_custom_call.1} parent=39 // pred_region
          %s269 = sand.u32 %s31, 1
          %s270 = scalar_lea.sflag [#allocation3], %s269
          %s271 = sand.u32 %s31, 1
          %s272 = smul.addr %s271, 8
          %s273 = scalar_lea.vmem [#allocation2], %s272
          %s275 = ssub.s32 128, 128
          %276 = vsyncadd %s270, %s275
          %s277 = smul.addr %s21, 128
          %s278 = scalar_lea.hbm %s0, %s277
          %s280 = sshll.u32 %s273, 4
          %s281 = int_to_ptr.vmem [resolvable:$true] %s280
          %283 = dma.hbm_to_vmem [thread:$0]  %s278, 128, %s281, %s270
        $region44: #{tpu_custom_call.1} parent=39 // pred_fallthru
          _
      $region40: #{tpu_custom_call.1} parent=5 // pred_fallthru
        _
      %p284 = scmp.le.s32.totalorder 1, %s21
      %p285 = scmp.lt.s32.totalorder %s21, 3
      %p286 = pnand %p284, %p285
      %p287 = pneg %p286
      // Predicated region
      $region45: #{tpu_custom_call.1} parent=5 // pred_check
        _
      $region46: #{tpu_custom_call.1} parent=5 // pred_check_branch
        %289 = sbr.rel (%p286) target = $region48
      $region47: #{tpu_custom_call.1} parent=5 // pred_region
        %s290 = ssub.s32 %s21, 1
        %s291 = sand.u32 %s34, 1
        %s292 = scalar_lea.sflag [#allocation3], %s291
        %s293 = sand.u32 %s34, 1
        %s294 = smul.addr %s293, 8
        %s295 = scalar_lea.vmem [#allocation2], %s294
        // Predicated region
        $region49: #{tpu_custom_call.1} parent=47 // pred_check
          %p296 = pneg %p47
        $region50: #{tpu_custom_call.1} parent=47 // pred_check_branch
          %298 = sbr.rel (%p296) target = $region52
        $region51: #{tpu_custom_call.1} parent=47 // pred_region
          %299 = dma.done %s292, 128
        $region52: #{tpu_custom_call.1} parent=47 // pred_fallthru
          _
        // Predicated region
        $region53: #{tpu_custom_call.1} parent=47 // pred_check
          %p300 = pneg %p68
        $region54: #{tpu_custom_call.1} parent=47 // pred_check_branch
          %302 = sbr.rel (%p300) target = $region56
        $region55: #{tpu_custom_call.1} parent=47 // pred_region
          %303 = dma.done [#allocation6], 2048
        $region56: #{tpu_custom_call.1} parent=47 // pred_fallthru
          _
        // Predicated region
        $region57: #{tpu_custom_call.1} parent=47 // pred_check
          %p304 = pneg %p110
        $region58: #{tpu_custom_call.1} parent=47 // pred_check_branch
          %306 = sbr.rel (%p304) target = $region60
        $region59: #{tpu_custom_call.1} parent=47 // pred_region
          %307 = dma.done [#allocation6], 2048
        $region60: #{tpu_custom_call.1} parent=47 // pred_fallthru
          _
        // Predicated region
        $region61: #{tpu_custom_call.1} parent=47 // pred_check
          %p308 = pneg %p152
        $region62: #{tpu_custom_call.1} parent=47 // pred_check_branch
          %310 = sbr.rel (%p308) target = $region64
        $region63: #{tpu_custom_call.1} parent=47 // pred_region
          %311 = dma.done [#allocation9], 2048
        $region64: #{tpu_custom_call.1} parent=47 // pred_fallthru
          _
        %s312 = sand.u32 %s34, 1
        %s313 = scalar_lea.sflag [#allocation3], %s312
        %s314 = sand.u32 %s34, 1
        %s315 = smul.addr %s314, 8
        %s316 = scalar_lea.vmem [#allocation2], %s315
        %p317 = pneg %p47
        %p318 = pneg %p44
        %p319 = pneg %p68
        %p320 = pneg %p65
        %p321 = pneg %p89
        %p322 = pneg %p86
        %p323 = pneg %p110
        %p324 = pneg %p107
        %p325 = pneg %p131
        %p326 = pneg %p128
        %p327 = pneg %p152
        %p328 = pneg %p149
        %p329 = pneg %p173
        %p330 = pneg %p170
        %p331 = pneg %p199
        %p332 = pneg %p196
        %s333 = sand.u32 %s186, 1
        %s334 = scalar_lea.sflag [#allocation4], %s333
        %s335 = sand.u32 %s186, 1
        %s336 = smul.addr %s335, 8
        %s337 = scalar_lea.vmem [#allocation10], %s336
        %v338 = vld [vmem:[%s295] sm:$0xff]
        %v339 = vld [vmem:[#allocation5] sm:$0xff]
        %v340 = vld [vmem:[#allocation5 + $0x8] sm:$0xff]
        %v341 = vld [vmem:[#allocation5 + $0x10] sm:$0xff]
        %v342 = vld [vmem:[#allocation5 + $0x18] sm:$0xff]
        %v343 = vld [vmem:[#allocation5 + $0x20] sm:$0xff]
        %v344 = vld [vmem:[#allocation5 + $0x28] sm:$0xff]
        %v345 = vld [vmem:[#allocation5 + $0x30] sm:$0xff]
        %v346 = vld [vmem:[#allocation5 + $0x38] sm:$0xff]
        %v347 = vld [vmem:[#allocation5 + $0x40] sm:$0xff]
        %v348 = vld [vmem:[#allocation5 + $0x48] sm:$0xff]
        %v349 = vld [vmem:[#allocation5 + $0x50] sm:$0xff]
        %v350 = vld [vmem:[#allocation5 + $0x58] sm:$0xff]
        %v351 = vld [vmem:[#allocation5 + $0x60] sm:$0xff]
        %v352 = vld [vmem:[#allocation5 + $0x68] sm:$0xff]
        %v353 = vld [vmem:[#allocation5 + $0x70] sm:$0xff]
        %v354 = vld [vmem:[#allocation5 + $0x78] sm:$0xff]
        %v355 = vld [vmem:[%s2] sm:$0x1]
        %v357 = vlaneseq
        %v358 = vshrl.u32 %v357, 7
        %v359 = vsub.s32 0, %v358
        %v360 = vrot.slane %v355, %v359
        %362 = vmatprep.subr.mxu0 0.0
        %363 = vmatpush1.msra.mxu0 %v339
        %364 = vmatprep.subr.mxu0 0.0
        %365 = vmatpush1.msra.mxu0 %v340
        %366 = vmatprep.subr.mxu0 0.0
        %367 = vmatpush1.msra.mxu0 %v341
        %368 = vmatprep.subr.mxu0 0.0
        %369 = vmatpush1.msra.mxu0 %v342
        %370 = vmatprep.subr.mxu0 0.0
        %371 = vmatpush1.msra.mxu0 %v343
        %372 = vmatprep.subr.mxu0 0.0
        %373 = vmatpush1.msra.mxu0 %v344
        %374 = vmatprep.subr.mxu0 0.0
        %375 = vmatpush1.msra.mxu0 %v345
        %376 = vmatprep.subr.mxu0 0.0
        %377 = vmatpush1.msra.mxu0 %v346
        %378 = vmatprep.subr.mxu0 0.0
        %379 = vmatpush1.msra.mxu0 %v347
        %380 = vmatprep.subr.mxu0 0.0
        %381 = vmatpush1.msra.mxu0 %v348
        %382 = vmatprep.subr.mxu0 0.0
        %383 = vmatpush1.msra.mxu0 %v349
        %384 = vmatprep.subr.mxu0 0.0
        %385 = vmatpush1.msra.mxu0 %v350
        %386 = vmatprep.subr.mxu0 0.0
        %387 = vmatpush1.msra.mxu0 %v351
        %388 = vmatprep.subr.mxu0 0.0
        %389 = vmatpush1.msra.mxu0 %v352
        %390 = vmatprep.subr.mxu0 0.0
        %391 = vmatpush1.msra.mxu0 %v353
        %392 = vmatprep.subr.mxu0 0.0
        %393 = vmatpush1.msra.mxu0 %v354
        %394 = vmatprep.subr.mxu0 0.0
        %395 = vmatpush1.msra.mxu0 0.0
        %396 = vmatprep.subr.mxu0 0.0
        %397 = vmatpush1.msra.mxu0 0.0
        %398 = vmatprep.subr.mxu0 0.0
        %399 = vmatpush1.msra.mxu0 0.0
        %400 = vmatprep.subr.mxu0 0.0
        %401 = vmatpush1.msra.mxu0 0.0
        %402 = vmatprep.subr.mxu0 0.0
        %403 = vmatpush1.msra.mxu0 0.0
        %404 = vmatprep.subr.mxu0 0.0
        %405 = vmatpush1.msra.mxu0 0.0
        %406 = vmatprep.subr.mxu0 0.0
        %407 = vmatpush1.msra.mxu0 0.0
        %408 = vmatprep.subr.mxu0 0.0
        %409 = vmatpush1.msra.mxu0 0.0
        %410 = vmatprep.subr.mxu0 0.0
        %411 = vmatpush1.msra.mxu0 0.0
        %412 = vmatprep.subr.mxu0 0.0
        %413 = vmatpush1.msra.mxu0 0.0
        %414 = vmatprep.subr.mxu0 0.0
        %415 = vmatpush1.msra.mxu0 0.0
        %416 = vmatprep.subr.mxu0 0.0
        %417 = vmatpush1.msra.mxu0 0.0
        %418 = vmatprep.subr.mxu0 0.0
        %419 = vmatpush1.msra.mxu0 0.0
        %420 = vmatprep.subr.mxu0 0.0
        %421 = vmatpush1.msra.mxu0 0.0
        %422 = vmatprep.subr.mxu0 0.0
        %423 = vmatpush1.msra.mxu0 0.0
        %424 = vmatprep.subr.mxu0 0.0
        %425 = vmatpush1.msra.mxu0 0.0
        %426 = vmatprep.mubr.f32.mxu0 0.0
        %427 = vmatmul.mubr.f32.gmra.mrb[0].mxu0 %v338
        %v428 = vpop.f32.mrb[0].mxu0
        %v429 = vadd.f32 %v360, %v428
        %v430 = vpop.f32.mrb[0].mxu0
        %431 = vdwg.mxu0
        %v432 = vmul.f32 %v429, 0.5
        %v433 = vmul.f32 %v429, 0.70710677
        %v434 = verf.f32.pop %v433
        %v435 = vadd.f32 %v434, 1.0
        %v436 = vmul.f32 %v432, %v435
        %v437 = vld [vmem:[#allocation7] sm:$0xff]
        %v438 = vld [vmem:[#allocation7 + $0x8] sm:$0xff]
        %v439 = vld [vmem:[#allocation7 + $0x10] sm:$0xff]
        %v440 = vld [vmem:[#allocation7 + $0x18] sm:$0xff]
        %v441 = vld [vmem:[#allocation7 + $0x20] sm:$0xff]
        %v442 = vld [vmem:[#allocation7 + $0x28] sm:$0xff]
        %v443 = vld [vmem:[#allocation7 + $0x30] sm:$0xff]
        %v444 = vld [vmem:[#allocation7 + $0x38] sm:$0xff]
        %v445 = vld [vmem:[#allocation7 + $0x40] sm:$0xff]
        %v446 = vld [vmem:[#allocation7 + $0x48] sm:$0xff]
        %v447 = vld [vmem:[#allocation7 + $0x50] sm:$0xff]
        %v448 = vld [vmem:[#allocation7 + $0x58] sm:$0xff]
        %v449 = vld [vmem:[#allocation7 + $0x60] sm:$0xff]
        %v450 = vld [vmem:[#allocation7 + $0x68] sm:$0xff]
        %v451 = vld [vmem:[#allocation7 + $0x70] sm:$0xff]
        %v452 = vld [vmem:[#allocation7 + $0x78] sm:$0xff]
        %v453 = vld [vmem:[%s4] sm:$0x1]
        %v455 = vlaneseq
        %v456 = vshrl.u32 %v455, 7
        %v457 = vsub.s32 0, %v456
        %v458 = vrot.slane %v453, %v457
        %460 = vmatprep.subr.mxu0 0.0
        %461 = vmatpush1.msra.mxu0 %v437
        %462 = vmatprep.subr.mxu0 0.0
        %463 = vmatpush1.msra.mxu0 %v438
        %464 = vmatprep.subr.mxu0 0.0
        %465 = vmatpush1.msra.mxu0 %v439
        %466 = vmatprep.subr.mxu0 0.0
        %467 = vmatpush1.msra.mxu0 %v440
        %468 = vmatprep.subr.mxu0 0.0
        %469 = vmatpush1.msra.mxu0 %v441
        %470 = vmatprep.subr.mxu0 0.0
        %471 = vmatpush1.msra.mxu0 %v442
        %472 = vmatprep.subr.mxu0 0.0
        %473 = vmatpush1.msra.mxu0 %v443
        %474 = vmatprep.subr.mxu0 0.0
        %475 = vmatpush1.msra.mxu0 %v444
        %476 = vmatprep.subr.mxu0 0.0
        %477 = vmatpush1.msra.mxu0 %v445
        %478 = vmatprep.subr.mxu0 0.0
        %479 = vmatpush1.msra.mxu0 %v446
        %480 = vmatprep.subr.mxu0 0.0
        %481 = vmatpush1.msra.mxu0 %v447
        %482 = vmatprep.subr.mxu0 0.0
        %483 = vmatpush1.msra.mxu0 %v448
        %484 = vmatprep.subr.mxu0 0.0
        %485 = vmatpush1.msra.mxu0 %v449
        %486 = vmatprep.subr.mxu0 0.0
        %487 = vmatpush1.msra.mxu0 %v450
        %488 = vmatprep.subr.mxu0 0.0
        %489 = vmatpush1.msra.mxu0 %v451
        %490 = vmatprep.subr.mxu0 0.0
        %491 = vmatpush1.msra.mxu0 %v452
        %492 = vmatprep.subr.mxu0 0.0
        %493 = vmatpush1.msra.mxu0 0.0
        %494 = vmatprep.subr.mxu0 0.0
        %495 = vmatpush1.msra.mxu0 0.0
        %496 = vmatprep.subr.mxu0 0.0
        %497 = vmatpush1.msra.mxu0 0.0
        %498 = vmatprep.subr.mxu0 0.0
        %499 = vmatpush1.msra.mxu0 0.0
        %500 = vmatprep.subr.mxu0 0.0
        %501 = vmatpush1.msra.mxu0 0.0
        %502 = vmatprep.subr.mxu0 0.0
        %503 = vmatpush1.msra.mxu0 0.0
        %504 = vmatprep.subr.mxu0 0.0
        %505 = vmatpush1.msra.mxu0 0.0
        %506 = vmatprep.subr.mxu0 0.0
        %507 = vmatpush1.msra.mxu0 0.0
        %508 = vmatprep.subr.mxu0 0.0
        %509 = vmatpush1.msra.mxu0 0.0
        %510 = vmatprep.subr.mxu0 0.0
        %511 = vmatpush1.msra.mxu0 0.0
        %512 = vmatprep.subr.mxu0 0.0
        %513 = vmatpush1.msra.mxu0 0.0
        %514 = vmatprep.subr.mxu0 0.0
        %515 = vmatpush1.msra.mxu0 0.0
        %516 = vmatprep.subr.mxu0 0.0
        %517 = vmatpush1.msra.mxu0 0.0
        %518 = vmatprep.subr.mxu0 0.0
        %519 = vmatpush1.msra.mxu0 0.0
        %520 = vmatprep.subr.mxu0 0.0
        %521 = vmatpush1.msra.mxu0 0.0
        %522 = vmatprep.subr.mxu0 0.0
        %523 = vmatpush1.msra.mxu0 0.0
        %524 = vmatprep.mubr.f32.mxu0 0.0
        %525 = vmatmul.mubr.f32.gmra.mrb[0].mxu0 %v436
        %v526 = vpop.f32.mrb[0].mxu0
        %v527 = vadd.f32 %v458, %v526
        %v528 = vpop.f32.mrb[0].mxu0
        %529 = vdwg.mxu0
        %v530 = vmul.f32 %v527, 0.5
        %v531 = vmul.f32 %v527, 0.70710677
        %v532 = verf.f32.pop %v531
        %v533 = vadd.f32 %v532, 1.0
        %v534 = vmul.f32 %v530, %v533
        %v535 = vld [vmem:[#allocation8] sm:$0xff]
        %v536 = vld [vmem:[#allocation8 + $0x8] sm:$0xff]
        %v537 = vld [vmem:[#allocation8 + $0x10] sm:$0xff]
        %v538 = vld [vmem:[#allocation8 + $0x18] sm:$0xff]
        %v539 = vld [vmem:[#allocation8 + $0x20] sm:$0xff]
        %v540 = vld [vmem:[#allocation8 + $0x28] sm:$0xff]
        %v541 = vld [vmem:[#allocation8 + $0x30] sm:$0xff]
        %v542 = vld [vmem:[#allocation8 + $0x38] sm:$0xff]
        %v543 = vld [vmem:[#allocation8 + $0x40] sm:$0xff]
        %v544 = vld [vmem:[#allocation8 + $0x48] sm:$0xff]
        %v545 = vld [vmem:[#allocation8 + $0x50] sm:$0xff]
        %v546 = vld [vmem:[#allocation8 + $0x58] sm:$0xff]
        %v547 = vld [vmem:[#allocation8 + $0x60] sm:$0xff]
        %v548 = vld [vmem:[#allocation8 + $0x68] sm:$0xff]
        %v549 = vld [vmem:[#allocation8 + $0x70] sm:$0xff]
        %v550 = vld [vmem:[#allocation8 + $0x78] sm:$0xff]
        %v551 = vld [vmem:[%s6] sm:$0x1]
        %v553 = vlaneseq
        %v554 = vshrl.u32 %v553, 7
        %v555 = vsub.s32 0, %v554
        %v556 = vrot.slane %v551, %v555
        %558 = vmatprep.subr.mxu0 0.0
        %559 = vmatpush1.msra.mxu0 %v535
        %560 = vmatprep.subr.mxu0 0.0
        %561 = vmatpush1.msra.mxu0 %v536
        %562 = vmatprep.subr.mxu0 0.0
        %563 = vmatpush1.msra.mxu0 %v537
        %564 = vmatprep.subr.mxu0 0.0
        %565 = vmatpush1.msra.mxu0 %v538
        %566 = vmatprep.subr.mxu0 0.0
        %567 = vmatpush1.msra.mxu0 %v539
        %568 = vmatprep.subr.mxu0 0.0
        %569 = vmatpush1.msra.mxu0 %v540
        %570 = vmatprep.subr.mxu0 0.0
        %571 = vmatpush1.msra.mxu0 %v541
        %572 = vmatprep.subr.mxu0 0.0
        %573 = vmatpush1.msra.mxu0 %v542
        %574 = vmatprep.subr.mxu0 0.0
        %575 = vmatpush1.msra.mxu0 %v543
        %576 = vmatprep.subr.mxu0 0.0
        %577 = vmatpush1.msra.mxu0 %v544
        %578 = vmatprep.subr.mxu0 0.0
        %579 = vmatpush1.msra.mxu0 %v545
        %580 = vmatprep.subr.mxu0 0.0
        %581 = vmatpush1.msra.mxu0 %v546
        %582 = vmatprep.subr.mxu0 0.0
        %583 = vmatpush1.msra.mxu0 %v547
        %584 = vmatprep.subr.mxu0 0.0
        %585 = vmatpush1.msra.mxu0 %v548
        %586 = vmatprep.subr.mxu0 0.0
        %587 = vmatpush1.msra.mxu0 %v549
        %588 = vmatprep.subr.mxu0 0.0
        %589 = vmatpush1.msra.mxu0 %v550
        %590 = vmatprep.subr.mxu0 0.0
        %591 = vmatpush1.msra.mxu0 0.0
        %592 = vmatprep.subr.mxu0 0.0
        %593 = vmatpush1.msra.mxu0 0.0
        %594 = vmatprep.subr.mxu0 0.0
        %595 = vmatpush1.msra.mxu0 0.0
        %596 = vmatprep.subr.mxu0 0.0
        %597 = vmatpush1.msra.mxu0 0.0
        %598 = vmatprep.subr.mxu0 0.0
        %599 = vmatpush1.msra.mxu0 0.0
        %600 = vmatprep.subr.mxu0 0.0
        %601 = vmatpush1.msra.mxu0 0.0
        %602 = vmatprep.subr.mxu0 0.0
        %603 = vmatpush1.msra.mxu0 0.0
        %604 = vmatprep.subr.mxu0 0.0
        %605 = vmatpush1.msra.mxu0 0.0
        %606 = vmatprep.subr.mxu0 0.0
        %607 = vmatpush1.msra.mxu0 0.0
        %608 = vmatprep.subr.mxu0 0.0
        %609 = vmatpush1.msra.mxu0 0.0
        %610 = vmatprep.subr.mxu0 0.0
        %611 = vmatpush1.msra.mxu0 0.0
        %612 = vmatprep.subr.mxu0 0.0
        %613 = vmatpush1.msra.mxu0 0.0
        %614 = vmatprep.subr.mxu0 0.0
        %615 = vmatpush1.msra.mxu0 0.0
        %616 = vmatprep.subr.mxu0 0.0
        %617 = vmatpush1.msra.mxu0 0.0
        %618 = vmatprep.subr.mxu0 0.0
        %619 = vmatpush1.msra.mxu0 0.0
        %620 = vmatprep.subr.mxu0 0.0
        %621 = vmatpush1.msra.mxu0 0.0
        %622 = vmatprep.mubr.f32.mxu0 0.0
        %623 = vmatmul.mubr.f32.gmra.mrb[0].mxu0 %v534
        %v624 = vpop.f32.mrb[0].mxu0
        %v625 = vadd.f32 %v556, %v624
        %v626 = vpop.f32.mrb[0].mxu0
        %627 = vdwg.mxu0
        %628 = vst [vmem:[%s337] sm:$0xff] %v625
        %s629 = sand.u32 %s186, 1
        %s630 = scalar_lea.sflag [#allocation4], %s629
        %s631 = sand.u32 %s186, 1
        %s632 = smul.addr %s631, 8
        %s633 = scalar_lea.vmem [#allocation10], %s632
        // Predicated region
        $region65: #{tpu_custom_call.1} parent=47 // pred_check
          %p634 = pneg %p196
        $region66: #{tpu_custom_call.1} parent=47 // pred_check_branch
          %636 = sbr.rel (%p634) target = $region68
        $region67: #{tpu_custom_call.1} parent=47 // pred_region
          %s638 = ssub.s32 128, 128
          %639 = vsyncadd %s630, %s638
          %s640 = smul.addr %s26, 128
          %s641 = scalar_lea.hbm %s7, %s640
          %s643 = sshll.u32 %s633, 4
          %s644 = int_to_ptr.vmem [resolvable:$true] %s643
          %646 = dma.vmem_to_hbm [thread:$0]  %s644, 128, %s641, %s630
        $region68: #{tpu_custom_call.1} parent=47 // pred_fallthru
          _
      $region48: #{tpu_custom_call.1} parent=5 // pred_fallthru
        _
      %p647 = scmp.le.s32.totalorder 2, %s21
      // Predicated region
      $region69: #{tpu_custom_call.1} parent=5 // pred_check
        %p648 = pneg %p647
      $region70: #{tpu_custom_call.1} parent=5 // pred_check_branch
        %650 = sbr.rel (%p648) target = $region72
      $region71: #{tpu_custom_call.1} parent=5 // pred_region
        %s651 = ssub.s32 %s21, 2
        // Predicated region
        $region73: #{tpu_custom_call.1} parent=71 // pred_check
          %p652 = pneg %p202
        $region74: #{tpu_custom_call.1} parent=71 // pred_check_branch
          %654 = sbr.rel (%p652) target = $region76
        $region75: #{tpu_custom_call.1} parent=71 // pred_region
          %s655 = sand.u32 %s187, 1
          %s656 = scalar_lea.sflag [#allocation4], %s655
          %s657 = sand.u32 %s187, 1
          %s658 = smul.addr %s657, 8
          %s659 = scalar_lea.vmem [#allocation10], %s658
          %660 = dma.done %s656, 128
        $region76: #{tpu_custom_call.1} parent=71 // pred_fallthru
          _
      $region72: #{tpu_custom_call.1} parent=5 // pred_fallthru
        _
    $region6: #{tpu_custom_call.1} parent=1 // loop_footer
      %s25 = sadd.s32 1, %s21
    $region7: #{tpu_custom_call.1} parent=1 // loop_footer_branch
      %20 = sbr.rel target = $region3
    $region8: #{tpu_custom_call.1} parent=1 // loop_exit
      _
    %661 = vsyncpa [#allocation3], 1
    %s662 = scalar_lea.sflag [#allocation3], 1
    %663 = vsyncpa %s662, 1
    %664 = vsyncpa [#allocation6], 1
    %665 = vsyncpa [#allocation9], 1
    %666 = vsyncpa [#allocation4], 1
    %s667 = scalar_lea.sflag [#allocation4], 1
    %668 = vsyncpa %s667, 1

// kernel: tpu_custom_call.1
$region0: #{tpu_custom_call.1}
  #allocation0 [shape = 'u32[]', space=smem, size = 0x4, offset = 0x4, fixed_abs, tag = 'smem constant byte address 0x4 - core index']
  #allocation1 [shape = 'u32[144,128]{1,0:T(1,128)}', space=vmem, size = 0x12000, scoped, tag = 'internal scratch']
  %s0 = inlined_call_operand.hbm [shape: f32[16,128], index: 0, kind: input, shape index: {}]
  %s1 = inlined_call_operand.hbm [shape: f32[128,128], index: 1, kind: input, shape index: {}]
  %s2 = inlined_call_operand.vmem [shape: f32[1,128], index: 2, kind: input, shape index: {}]
  %s3 = inlined_call_operand.hbm [shape: f32[128,128], index: 3, kind: input, shape index: {}]
  %s4 = inlined_call_operand.vmem [shape: f32[1,128], index: 4, kind: input, shape index: {}]
  %s5 = inlined_call_operand.hbm [shape: f32[128,128], index: 5, kind: input, shape index: {}]
  %s6 = inlined_call_operand.vmem [shape: f32[1,128], index: 6, kind: input, shape index: {}]
  %s7 = inlined_call_operand.hbm [shape: f32[16,128], index: 7, kind: output, shape index: {}]
  %s8 = sld [smem:[#allocation0]]
  $region77: #{tpu_custom_call.1} parent=0
    _
  %s10 = ssub.s32 1, %s8
  %s11 = scalar_select 0, %s10, %s8
  $region1: #{tpu_custom_call.1} parent=0
    #allocation2 [shape = 'u8[8192]{0}', space=vmem, size = 0x2000, scoped, tag = 'input window, operand 0']
    #allocation3 [shape = 's32[2]{0}', space=sflag, size = 0x8, scoped, tag = 'scoped memory for tpu_custom_call.1']
    #allocation4 [shape = 's32[2]{0}', space=sflag, size = 0x8, scoped, tag = 'scoped memory for tpu_custom_call.1']
    #allocation5 [shape = 'u8[65536]{0}', space=vmem, size = 0x10000, scoped, tag = 'input window, operand 1, single buffered']
    #allocation6 [shape = 's32[1]{0}', space=sflag, size = 0x4, scoped, tag = 'scoped memory for tpu_custom_call.1']
    #allocation7 [shape = 'u8[65536]{0}', space=vmem, size = 0x10000, scoped, tag = 'input window, operand 3, single buffered']
    #allocation8 [shape = 'u8[65536]{0}', space=vmem, size = 0x10000, scoped, tag = 'input window, operand 5, single buffered']
    #allocation9 [shape = 's32[1]{0}', space=sflag, size = 0x4, scoped, tag = 'scoped memory for tpu_custom_call.1']
    #allocation10 [shape = 'u8[8192]{0}', space=vmem, size = 0x2000, scoped, tag = 'output window, operand 0']
    %12 = vsyncpa [#allocation3], 0
    %s13 = scalar_lea.sflag [#allocation3], 1
    %14 = vsyncpa %s13, 0
    %15 = vsyncpa [#allocation6], 0
    %16 = vsyncpa [#allocation9], 0
    %17 = vsyncpa [#allocation4], 0
    %s18 = scalar_lea.sflag [#allocation4], 1
    %19 = vsyncpa %s18, 0
    loop: start=0, step=1, limit=4
    $region2: #{tpu_custom_call.1} parent=1 // loop_pre_header
      _
    $region3: #{tpu_custom_call.1} parent=1 // loop_header
      %s21 = sphi 0, %s25
      %p22 = scmp.ge.s32.totalorder %s21, 4
      %s31 = sphi 0, %s33
      %s34 = sphi 0, %s31
      %s35 = sphi 0, %s34
      %s51 = sphi 0, %s35
      %s55 = sphi 0, %s55
      %s57 = sphi 0, %s55
      %s58 = sphi 0, %s57
      %s72 = sphi 0, %s58
      %s76 = sphi 0, %s76
      %s78 = sphi 0, %s76
      %s79 = sphi 0, %s78
      %s93 = sphi 0, %s79
      %s97 = sphi 0, %s97
      %s99 = sphi 0, %s97
      %s100 = sphi 0, %s99
      %s114 = sphi 0, %s100
      %s118 = sphi 0, %s118
      %s120 = sphi 0, %s118
      %s121 = sphi 0, %s120
      %s135 = sphi 0, %s121
      %s139 = sphi 0, %s139
      %s141 = sphi 0, %s139
      %s142 = sphi 0, %s141
      %s156 = sphi 0, %s142
      %s160 = sphi 0, %s160
      %s162 = sphi 0, %s160
      %s163 = sphi 0, %s162
      %s177 = sphi 0, %s163
      %s183 = sphi 0, %s185
      %s186 = sphi 0, %s183
      %s187 = sphi 0, %s186
      %s203 = sphi 0, %s187
    $region4: #{tpu_custom_call.1} parent=1 // loop_header_branch
      %24 = sbr.rel (%p22) target = $region8
    $region5: #{tpu_custom_call.1} parent=1 // loop_body
      %s26 = ssub.s32 %s21, 1
      %s27 = ssub.s32 %s21, 2
      %s28 = sadd.s32 %s21, 1
      %s29 = ssub.s32 %s21, %s28
      %p30 = scmp.eq.s32.totalorder %s29, 0
      %s32 = sadd.s32 %s31, 1
      %s33 = scalar_select %p30, %s31, %s32
      %p36 = pneg %p30
      %p37 = scmp.eq.s32.totalorder %s21, 1
      %p38 = por %p36, %p37
      %p39 = scmp.ne.s32.totalorder %s31, %s34
      %p40 = scmp.eq.s32.totalorder %s21, 0
      %p41 = por %p39, %p40
      %p42 = scmp.ne.s32.totalorder %s31, %s34
      %p43 = scmp.eq.s32.totalorder %s26, 1
      %p44 = por %p42, %p43
      %p45 = scmp.ne.s32.totalorder %s34, %s35
      %p46 = scmp.eq.s32.totalorder %s26, 0
      %p47 = por %p45, %p46
      %p48 = scmp.ne.s32.totalorder %s34, %s35
      %p49 = scmp.eq.s32.totalorder %s27, 1
      %p50 = por %p48, %p49
      %p52 = scmp.ne.s32.totalorder %s35, %s51
      %p53 = scmp.eq.s32.totalorder %s27, 0
      %p54 = por %p52, %p53
      %s56 = sadd.s32 %s55, 1
      %p59 = scmp.eq.s32.totalorder %s21, 1
      %p60 = scmp.ne.s32.totalorder %s55, %s57
      %p61 = scmp.eq.s32.totalorder %s21, 0
      %p62 = por %p60, %p61
      %p63 = scmp.ne.s32.totalorder %s55, %s57
      %p64 = scmp.eq.s32.totalorder %s26, 1
      %p65 = por %p63, %p64
      %p66 = scmp.ne.s32.totalorder %s57, %s58
      %p67 = scmp.eq.s32.totalorder %s26, 0
      %p68 = por %p66, %p67
      %p69 = scmp.ne.s32.totalorder %s57, %s58
      %p70 = scmp.eq.s32.totalorder %s27, 1
      %p71 = por %p69, %p70
      %p73 = scmp.ne.s32.totalorder %s58, %s72
      %p74 = scmp.eq.s32.totalorder %s27, 0
      %p75 = por %p73, %p74
      %s77 = sadd.s32 %s76, 1
      %p80 = scmp.eq.s32.totalorder %s21, 1
      %p81 = scmp.ne.s32.totalorder %s76, %s78
      %p82 = scmp.eq.s32.totalorder %s21, 0
      %p83 = por %p81, %p82
      %p84 = scmp.ne.s32.totalorder %s76, %s78
      %p85 = scmp.eq.s32.totalorder %s26, 1
      %p86 = por %p84, %p85
      %p87 = scmp.ne.s32.totalorder %s78, %s79
      %p88 = scmp.eq.s32.totalorder %s26, 0
      %p89 = por %p87, %p88
      %p90 = scmp.ne.s32.totalorder %s78, %s79
      %p91 = scmp.eq.s32.totalorder %s27, 1
      %p92 = por %p90, %p91
      %p94 = scmp.ne.s32.totalorder %s79, %s93
      %p95 = scmp.eq.s32.totalorder %s27, 0
      %p96 = por %p94, %p95
      %s98 = sadd.s32 %s97, 1
      %p101 = scmp.eq.s32.totalorder %s21, 1
      %p102 = scmp.ne.s32.totalorder %s97, %s99
      %p103 = scmp.eq.s32.totalorder %s21, 0
      %p104 = por %p102, %p103
      %p105 = scmp.ne.s32.totalorder %s97, %s99
      %p106 = scmp.eq.s32.totalorder %s26, 1
      %p107 = por %p105, %p106
      %p108 = scmp.ne.s32.totalorder %s99, %s100
      %p109 = scmp.eq.s32.totalorder %s26, 0
      %p110 = por %p108, %p109
      %p111 = scmp.ne.s32.totalorder %s99, %s100
      %p112 = scmp.eq.s32.totalorder %s27, 1
      %p113 = por %p111, %p112
      %p115 = scmp.ne.s32.totalorder %s100, %s114
      %p116 = scmp.eq.s32.totalorder %s27, 0
      %p117 = por %p115, %p116
      %s119 = sadd.s32 %s118, 1
      %p122 = scmp.eq.s32.totalorder %s21, 1
      %p123 = scmp.ne.s32.totalorder %s118, %s120
      %p124 = scmp.eq.s32.totalorder %s21, 0
      %p125 = por %p123, %p124
      %p126 = scmp.ne.s32.totalorder %s118, %s120
      %p127 = scmp.eq.s32.totalorder %s26, 1
      %p128 = por %p126, %p127
      %p129 = scmp.ne.s32.totalorder %s120, %s121
      %p130 = scmp.eq.s32.totalorder %s26, 0
      %p131 = por %p129, %p130
      %p132 = scmp.ne.s32.totalorder %s120, %s121
      %p133 = scmp.eq.s32.totalorder %s27, 1
      %p134 = por %p132, %p133
      %p136 = scmp.ne.s32.totalorder %s121, %s135
      %p137 = scmp.eq.s32.totalorder %s27, 0
      %p138 = por %p136, %p137
      %s140 = sadd.s32 %s139, 1
      %p143 = scmp.eq.s32.totalorder %s21, 1
      %p144 = scmp.ne.s32.totalorder %s139, %s141
      %p145 = scmp.eq.s32.totalorder %s21, 0
      %p146 = por %p144, %p145
      %p147 = scmp.ne.s32.totalorder %s139, %s141
      %p148 = scmp.eq.s32.totalorder %s26, 1
      %p149 = por %p147, %p148
      %p150 = scmp.ne.s32.totalorder %s141, %s142
      %p151 = scmp.eq.s32.totalorder %s26, 0
      %p152 = por %p150, %p151
      %p153 = scmp.ne.s32.totalorder %s141, %s142
      %p154 = scmp.eq.s32.totalorder %s27, 1
      %p155 = por %p153, %p154
      %p157 = scmp.ne.s32.totalorder %s142, %s156
      %p158 = scmp.eq.s32.totalorder %s27, 0
      %p159 = por %p157, %p158
      %s161 = sadd.s32 %s160, 1
      %p164 = scmp.eq.s32.totalorder %s21, 1
      %p165 = scmp.ne.s32.totalorder %s160, %s162
      %p166 = scmp.eq.s32.totalorder %s21, 0
      %p167 = por %p165, %p166
      %p168 = scmp.ne.s32.totalorder %s160, %s162
      %p169 = scmp.eq.s32.totalorder %s26, 1
      %p170 = por %p168, %p169
      %p171 = scmp.ne.s32.totalorder %s162, %s163
      %p172 = scmp.eq.s32.totalorder %s26, 0
      %p173 = por %p171, %p172
      %p174 = scmp.ne.s32.totalorder %s162, %s163
      %p175 = scmp.eq.s32.totalorder %s27, 1
      %p176 = por %p174, %p175
      %p178 = scmp.ne.s32.totalorder %s163, %s177
      %p179 = scmp.eq.s32.totalorder %s27, 0
      %p180 = por %p178, %p179
      %s181 = ssub.s32 %s21, %s28
      %p182 = scmp.eq.s32.totalorder %s181, 0
      %s184 = sadd.s32 %s183, 1
      %s185 = scalar_select %p182, %s183, %s184
      %p188 = pneg %p182
      %p189 = scmp.eq.s32.totalorder %s21, 1
      %p190 = por %p188, %p189
      %p191 = scmp.ne.s32.totalorder %s183, %s186
      %p192 = scmp.eq.s32.totalorder %s21, 0
      %p193 = por %p191, %p192
      %p194 = scmp.ne.s32.totalorder %s183, %s186
      %p195 = scmp.eq.s32.totalorder %s26, 1
      %p196 = por %p194, %p195
      %p197 = scmp.ne.s32.totalorder %s186, %s187
      %p198 = scmp.eq.s32.totalorder %s26, 0
      %p199 = por %p197, %p198
      %p200 = scmp.ne.s32.totalorder %s186, %s187
      %p201 = scmp.eq.s32.totalorder %s27, 1
      %p202 = por %p200, %p201
      %p204 = scmp.ne.s32.totalorder %s187, %s203
      %p205 = scmp.eq.s32.totalorder %s27, 0
      %p206 = por %p204, %p205
      %p207 = scmp.le.s32.totalorder 1, %s21
      %p208 = scmp.lt.s32.totalorder %s21, 3
      %p209 = pnand %p207, %p208
      %p210 = pneg %p209
      // Predicated region
      $region9: #{tpu_custom_call.1} parent=5 // pred_check
        _
      $region10: #{tpu_custom_call.1} parent=5 // pred_check_branch
        %212 = sbr.rel (%p209) target = $region12
      $region11: #{tpu_custom_call.1} parent=5 // pred_region
        %s213 = ssub.s32 %s21, 1
        // Predicated region
        $region13: #{tpu_custom_call.1} parent=11 // pred_check
          %p214 = pneg %p68
        $region14: #{tpu_custom_call.1} parent=11 // pred_check_branch
          %216 = sbr.rel (%p214) target = $region16
        $region15: #{tpu_custom_call.1} parent=11 // pred_region
          %s218 = ssub.s32 2048, 2048
          %219 = vsyncadd [#allocation6], %s218
          %s220 = sshll.u32 [#allocation5], 4
          %s221 = int_to_ptr.vmem [resolvable:$true] %s220
          %226 = dma.hbm_to_vmem [thread:$0]  %s1, 2048, %s221, [#allocation6], 128, 128, 8
        $region16: #{tpu_custom_call.1} parent=11 // pred_fallthru
          _
        // Predicated region
        $region17: #{tpu_custom_call.1} parent=11 // pred_check
          %p227 = pneg %p89
        $region18: #{tpu_custom_call.1} parent=11 // pred_check_branch
          %229 = sbr.rel (%p227) target = $region20
        $region19: #{tpu_custom_call.1} parent=11 // pred_region
          _
        $region20: #{tpu_custom_call.1} parent=11 // pred_fallthru
          _
        // Predicated region
        $region21: #{tpu_custom_call.1} parent=11 // pred_check
          %p230 = pneg %p110
        $region22: #{tpu_custom_call.1} parent=11 // pred_check_branch
          %232 = sbr.rel (%p230) target = $region24
        $region23: #{tpu_custom_call.1} parent=11 // pred_region
          %s234 = ssub.s32 2048, 2048
          %235 = vsyncadd [#allocation6], %s234
          %s236 = sshll.u32 [#allocation7], 4
          %s237 = int_to_ptr.vmem [resolvable:$true] %s236
          %242 = dma.hbm_to_vmem [thread:$0]  %s3, 2048, %s237, [#allocation6], 128, 128, 8
        $region24: #{tpu_custom_call.1} parent=11 // pred_fallthru
          _
        // Predicated region
        $region25: #{tpu_custom_call.1} parent=11 // pred_check
          %p243 = pneg %p131
        $region26: #{tpu_custom_call.1} parent=11 // pred_check_branch
          %245 = sbr.rel (%p243) target = $region28
        $region27: #{tpu_custom_call.1} parent=11 // pred_region
          _
        $region28: #{tpu_custom_call.1} parent=11 // pred_fallthru
          _
        // Predicated region
        $region29: #{tpu_custom_call.1} parent=11 // pred_check
          %p246 = pneg %p152
        $region30: #{tpu_custom_call.1} parent=11 // pred_check_branch
          %248 = sbr.rel (%p246) target = $region32
        $region31: #{tpu_custom_call.1} parent=11 // pred_region
          %s250 = ssub.s32 2048, 2048
          %251 = vsyncadd [#allocation9], %s250
          %s252 = sshll.u32 [#allocation8], 4
          %s253 = int_to_ptr.vmem [resolvable:$true] %s252
          %258 = dma.hbm_to_vmem [thread:$0]  %s5, 2048, %s253, [#allocation9], 128, 128, 8
        $region32: #{tpu_custom_call.1} parent=11 // pred_fallthru
          _
        // Predicated region
        $region33: #{tpu_custom_call.1} parent=11 // pred_check
          %p259 = pneg %p173
        $region34: #{tpu_custom_call.1} parent=11 // pred_check_branch
          %261 = sbr.rel (%p259) target = $region36
        $region35: #{tpu_custom_call.1} parent=11 // pred_region
          _
        $region36: #{tpu_custom_call.1} parent=11 // pred_fallthru
          _
      $region12: #{tpu_custom_call.1} parent=5 // pred_fallthru
        _
      %p262 = scmp.lt.s32.totalorder %s21, 2
      // Predicated region
      $region37: #{tpu_custom_call.1} parent=5 // pred_check
        %p263 = pneg %p262
      $region38: #{tpu_custom_call.1} parent=5 // pred_check_branch
        %265 = sbr.rel (%p263) target = $region40
      $region39: #{tpu_custom_call.1} parent=5 // pred_region
        // Predicated region
        $region41: #{tpu_custom_call.1} parent=39 // pred_check
          %p266 = pneg %p41
        $region42: #{tpu_custom_call.1} parent=39 // pred_check_branch
          %268 = sbr.rel (%p266) target = $region44
        $region43: #{tpu_custom_call.1} parent=39 // pred_region
          %s269 = sand.u32 %s31, 1
          %s270 = scalar_lea.sflag [#allocation3], %s269
          %s271 = sand.u32 %s31, 1
          %s272 = smul.addr %s271, 8
          %s273 = scalar_lea.vmem [#allocation2], %s272
          %s275 = ssub.s32 128, 128
          %276 = vsyncadd %s270, %s275
          %s277 = smul.addr %s21, 128
          %s278 = scalar_lea.hbm %s0, %s277
          %s280 = sshll.u32 %s273, 4
          %s281 = int_to_ptr.vmem [resolvable:$true] %s280
          %283 = dma.hbm_to_vmem [thread:$0]  %s278, 128, %s281, %s270
        $region44: #{tpu_custom_call.1} parent=39 // pred_fallthru
          _
      $region40: #{tpu_custom_call.1} parent=5 // pred_fallthru
        _
      %p284 = scmp.le.s32.totalorder 1, %s21
      %p285 = scmp.lt.s32.totalorder %s21, 3
      %p286 = pnand %p284, %p285
      %p287 = pneg %p286
      // Predicated region
      $region45: #{tpu_custom_call.1} parent=5 // pred_check
        _
      $region46: #{tpu_custom_call.1} parent=5 // pred_check_branch
        %289 = sbr.rel (%p286) target = $region48
      $region47: #{tpu_custom_call.1} parent=5 // pred_region
        %s290 = ssub.s32 %s21, 1
        %s291 = sand.u32 %s34, 1
        %s292 = scalar_lea.sflag [#allocation3], %s291
        %s293 = sand.u32 %s34, 1
        %s294 = smul.addr %s293, 8
        %s295 = scalar_lea.vmem [#allocation2], %s294
        // Predicated region
        $region49: #{tpu_custom_call.1} parent=47 // pred_check
          %p296 = pneg %p47
        $region50: #{tpu_custom_call.1} parent=47 // pred_check_branch
          %298 = sbr.rel (%p296) target = $region52
        $region51: #{tpu_custom_call.1} parent=47 // pred_region
          %299 = dma.done %s292, 128
        $region52: #{tpu_custom_call.1} parent=47 // pred_fallthru
          _
        // Predicated region
        $region53: #{tpu_custom_call.1} parent=47 // pred_check
          %p300 = pneg %p68
        $region54: #{tpu_custom_call.1} parent=47 // pred_check_branch
          %302 = sbr.rel (%p300) target = $region56
        $region55: #{tpu_custom_call.1} parent=47 // pred_region
          %303 = dma.done [#allocation6], 2048
        $region56: #{tpu_custom_call.1} parent=47 // pred_fallthru
          _
        // Predicated region
        $region57: #{tpu_custom_call.1} parent=47 // pred_check
          %p304 = pneg %p110
        $region58: #{tpu_custom_call.1} parent=47 // pred_check_branch
          %306 = sbr.rel (%p304) target = $region60
        $region59: #{tpu_custom_call.1} parent=47 // pred_region
          %307 = dma.done [#allocation6], 2048
        $region60: #{tpu_custom_call.1} parent=47 // pred_fallthru
          _
        // Predicated region
        $region61: #{tpu_custom_call.1} parent=47 // pred_check
          %p308 = pneg %p152
        $region62: #{tpu_custom_call.1} parent=47 // pred_check_branch
          %310 = sbr.rel (%p308) target = $region64
        $region63: #{tpu_custom_call.1} parent=47 // pred_region
          %311 = dma.done [#allocation9], 2048
        $region64: #{tpu_custom_call.1} parent=47 // pred_fallthru
          _
        %s312 = sand.u32 %s34, 1
        %s313 = scalar_lea.sflag [#allocation3], %s312
        %s314 = sand.u32 %s34, 1
        %s315 = smul.addr %s314, 8
        %s316 = scalar_lea.vmem [#allocation2], %s315
        %p317 = pneg %p47
        %p318 = pneg %p44
        %p319 = pneg %p68
        %p320 = pneg %p65
        %p321 = pneg %p89
        %p322 = pneg %p86
        %p323 = pneg %p110
        %p324 = pneg %p107
        %p325 = pneg %p131
        %p326 = pneg %p128
        %p327 = pneg %p152
        %p328 = pneg %p149
        %p329 = pneg %p173
        %p330 = pneg %p170
        %p331 = pneg %p199
        %p332 = pneg %p196
        %s333 = sand.u32 %s186, 1
        %s334 = scalar_lea.sflag [#allocation4], %s333
        %s335 = sand.u32 %s186, 1
        %s336 = smul.addr %s335, 8
        %s337 = scalar_lea.vmem [#allocation10], %s336
        %v338 = vld [vmem:[%s295] sm:$0xff]
        %v339 = vld [vmem:[#allocation5] sm:$0xff]
        %v340 = vld [vmem:[#allocation5 + $0x8] sm:$0xff]
        %v341 = vld [vmem:[#allocation5 + $0x10] sm:$0xff]
        %v342 = vld [vmem:[#allocation5 + $0x18] sm:$0xff]
        %v343 = vld [vmem:[#allocation5 + $0x20] sm:$0xff]
        %v344 = vld [vmem:[#allocation5 + $0x28] sm:$0xff]
        %v345 = vld [vmem:[#allocation5 + $0x30] sm:$0xff]
        %v346 = vld [vmem:[#allocation5 + $0x38] sm:$0xff]
        %v347 = vld [vmem:[#allocation5 + $0x40] sm:$0xff]
        %v348 = vld [vmem:[#allocation5 + $0x48] sm:$0xff]
        %v349 = vld [vmem:[#allocation5 + $0x50] sm:$0xff]
        %v350 = vld [vmem:[#allocation5 + $0x58] sm:$0xff]
        %v351 = vld [vmem:[#allocation5 + $0x60] sm:$0xff]
        %v352 = vld [vmem:[#allocation5 + $0x68] sm:$0xff]
        %v353 = vld [vmem:[#allocation5 + $0x70] sm:$0xff]
        %v354 = vld [vmem:[#allocation5 + $0x78] sm:$0xff]
        %v355 = vld [vmem:[%s2] sm:$0x1]
        %v357 = vlaneseq
        %v358 = vshrl.u32 %v357, 7
        %v359 = vsub.s32 0, %v358
        %v360 = vrot.slane %v355, %v359
        %362 = vmatprep.subr.mxu0 0.0
        %363 = vmatpush1.msra.mxu0 %v339
        %364 = vmatprep.subr.mxu0 0.0
        %365 = vmatpush1.msra.mxu0 %v340
        %366 = vmatprep.subr.mxu0 0.0
        %367 = vmatpush1.msra.mxu0 %v341
        %368 = vmatprep.subr.mxu0 0.0
        %369 = vmatpush1.msra.mxu0 %v342
        %370 = vmatprep.subr.mxu0 0.0
        %371 = vmatpush1.msra.mxu0 %v343
        %372 = vmatprep.subr.mxu0 0.0
        %373 = vmatpush1.msra.mxu0 %v344
        %374 = vmatprep.subr.mxu0 0.0
        %375 = vmatpush1.msra.mxu0 %v345
        %376 = vmatprep.subr.mxu0 0.0
        %377 = vmatpush1.msra.mxu0 %v346
        %378 = vmatprep.subr.mxu0 0.0
        %379 = vmatpush1.msra.mxu0 %v347
        %380 = vmatprep.subr.mxu0 0.0
        %381 = vmatpush1.msra.mxu0 %v348
        %382 = vmatprep.subr.mxu0 0.0
        %383 = vmatpush1.msra.mxu0 %v349
        %384 = vmatprep.subr.mxu0 0.0
        %385 = vmatpush1.msra.mxu0 %v350
        %386 = vmatprep.subr.mxu0 0.0
        %387 = vmatpush1.msra.mxu0 %v351
        %388 = vmatprep.subr.mxu0 0.0
        %389 = vmatpush1.msra.mxu0 %v352
        %390 = vmatprep.subr.mxu0 0.0
        %391 = vmatpush1.msra.mxu0 %v353
        %392 = vmatprep.subr.mxu0 0.0
        %393 = vmatpush1.msra.mxu0 %v354
        %394 = vmatprep.subr.mxu0 0.0
        %395 = vmatpush1.msra.mxu0 0.0
        %396 = vmatprep.subr.mxu0 0.0
        %397 = vmatpush1.msra.mxu0 0.0
        %398 = vmatprep.subr.mxu0 0.0
        %399 = vmatpush1.msra.mxu0 0.0
        %400 = vmatprep.subr.mxu0 0.0
        %401 = vmatpush1.msra.mxu0 0.0
        %402 = vmatprep.subr.mxu0 0.0
        %403 = vmatpush1.msra.mxu0 0.0
        %404 = vmatprep.subr.mxu0 0.0
        %405 = vmatpush1.msra.mxu0 0.0
        %406 = vmatprep.subr.mxu0 0.0
        %407 = vmatpush1.msra.mxu0 0.0
        %408 = vmatprep.subr.mxu0 0.0
        %409 = vmatpush1.msra.mxu0 0.0
        %410 = vmatprep.subr.mxu0 0.0
        %411 = vmatpush1.msra.mxu0 0.0
        %412 = vmatprep.subr.mxu0 0.0
        %413 = vmatpush1.msra.mxu0 0.0
        %414 = vmatprep.subr.mxu0 0.0
        %415 = vmatpush1.msra.mxu0 0.0
        %416 = vmatprep.subr.mxu0 0.0
        %417 = vmatpush1.msra.mxu0 0.0
        %418 = vmatprep.subr.mxu0 0.0
        %419 = vmatpush1.msra.mxu0 0.0
        %420 = vmatprep.subr.mxu0 0.0
        %421 = vmatpush1.msra.mxu0 0.0
        %422 = vmatprep.subr.mxu0 0.0
        %423 = vmatpush1.msra.mxu0 0.0
        %424 = vmatprep.subr.mxu0 0.0
        %425 = vmatpush1.msra.mxu0 0.0
        %426 = vmatprep.mubr.f32.mxu0 0.0
        %427 = vmatmul.mubr.f32.gmra.mrb[0].mxu0 %v338
        %v428 = vpop.f32.mrb[0].mxu0
        %v429 = vadd.f32 %v360, %v428
        %v430 = vpop.f32.mrb[0].mxu0
        %431 = vdwg.mxu0
        %v432 = vmul.f32 %v429, 0.5
        %v433 = vmul.f32 %v429, 0.70710677
        %v434 = verf.f32.pop %v433
        %v435 = vadd.f32 %v434, 1.0
        %v436 = vmul.f32 %v432, %v435
        %v437 = vld [vmem:[#allocation7] sm:$0xff]
        %v438 = vld [vmem:[#allocation7 + $0x8] sm:$0xff]
        %v439 = vld [vmem:[#allocation7 + $0x10] sm:$0xff]
        %v440 = vld [vmem:[#allocation7 + $0x18] sm:$0xff]
        %v441 = vld [vmem:[#allocation7 + $0x20] sm:$0xff]
        %v442 = vld [vmem:[#allocation7 + $0x28] sm:$0xff]
        %v443 = vld [vmem:[#allocation7 + $0x30] sm:$0xff]
        %v444 = vld [vmem:[#allocation7 + $0x38] sm:$0xff]
        %v445 = vld [vmem:[#allocation7 + $0x40] sm:$0xff]
        %v446 = vld [vmem:[#allocation7 + $0x48] sm:$0xff]
        %v447 = vld [vmem:[#allocation7 + $0x50] sm:$0xff]
        %v448 = vld [vmem:[#allocation7 + $0x58] sm:$0xff]
        %v449 = vld [vmem:[#allocation7 + $0x60] sm:$0xff]
        %v450 = vld [vmem:[#allocation7 + $0x68] sm:$0xff]
        %v451 = vld [vmem:[#allocation7 + $0x70] sm:$0xff]
        %v452 = vld [vmem:[#allocation7 + $0x78] sm:$0xff]
        %v453 = vld [vmem:[%s4] sm:$0x1]
        %v455 = vlaneseq
        %v456 = vshrl.u32 %v455, 7
        %v457 = vsub.s32 0, %v456
        %v458 = vrot.slane %v453, %v457
        %460 = vmatprep.subr.mxu0 0.0
        %461 = vmatpush1.msra.mxu0 %v437
        %462 = vmatprep.subr.mxu0 0.0
        %463 = vmatpush1.msra.mxu0 %v438
        %464 = vmatprep.subr.mxu0 0.0
        %465 = vmatpush1.msra.mxu0 %v439
        %466 = vmatprep.subr.mxu0 0.0
        %467 = vmatpush1.msra.mxu0 %v440
        %468 = vmatprep.subr.mxu0 0.0
        %469 = vmatpush1.msra.mxu0 %v441
        %470 = vmatprep.subr.mxu0 0.0
        %471 = vmatpush1.msra.mxu0 %v442
        %472 = vmatprep.subr.mxu0 0.0
        %473 = vmatpush1.msra.mxu0 %v443
        %474 = vmatprep.subr.mxu0 0.0
        %475 = vmatpush1.msra.mxu0 %v444
        %476 = vmatprep.subr.mxu0 0.0
        %477 = vmatpush1.msra.mxu0 %v445
        %478 = vmatprep.subr.mxu0 0.0
        %479 = vmatpush1.msra.mxu0 %v446
        %480 = vmatprep.subr.mxu0 0.0
        %481 = vmatpush1.msra.mxu0 %v447
        %482 = vmatprep.subr.mxu0 0.0
        %483 = vmatpush1.msra.mxu0 %v448
        %484 = vmatprep.subr.mxu0 0.0
        %485 = vmatpush1.msra.mxu0 %v449
        %486 = vmatprep.subr.mxu0 0.0
        %487 = vmatpush1.msra.mxu0 %v450
        %488 = vmatprep.subr.mxu0 0.0
        %489 = vmatpush1.msra.mxu0 %v451
        %490 = vmatprep.subr.mxu0 0.0
        %491 = vmatpush1.msra.mxu0 %v452
        %492 = vmatprep.subr.mxu0 0.0
        %493 = vmatpush1.msra.mxu0 0.0
        %494 = vmatprep.subr.mxu0 0.0
        %495 = vmatpush1.msra.mxu0 0.0
        %496 = vmatprep.subr.mxu0 0.0
        %497 = vmatpush1.msra.mxu0 0.0
        %498 = vmatprep.subr.mxu0 0.0
        %499 = vmatpush1.msra.mxu0 0.0
        %500 = vmatprep.subr.mxu0 0.0
        %501 = vmatpush1.msra.mxu0 0.0
        %502 = vmatprep.subr.mxu0 0.0
        %503 = vmatpush1.msra.mxu0 0.0
        %504 = vmatprep.subr.mxu0 0.0
        %505 = vmatpush1.msra.mxu0 0.0
        %506 = vmatprep.subr.mxu0 0.0
        %507 = vmatpush1.msra.mxu0 0.0
        %508 = vmatprep.subr.mxu0 0.0
        %509 = vmatpush1.msra.mxu0 0.0
        %510 = vmatprep.subr.mxu0 0.0
        %511 = vmatpush1.msra.mxu0 0.0
        %512 = vmatprep.subr.mxu0 0.0
        %513 = vmatpush1.msra.mxu0 0.0
        %514 = vmatprep.subr.mxu0 0.0
        %515 = vmatpush1.msra.mxu0 0.0
        %516 = vmatprep.subr.mxu0 0.0
        %517 = vmatpush1.msra.mxu0 0.0
        %518 = vmatprep.subr.mxu0 0.0
        %519 = vmatpush1.msra.mxu0 0.0
        %520 = vmatprep.subr.mxu0 0.0
        %521 = vmatpush1.msra.mxu0 0.0
        %522 = vmatprep.subr.mxu0 0.0
        %523 = vmatpush1.msra.mxu0 0.0
        %524 = vmatprep.mubr.f32.mxu0 0.0
        %525 = vmatmul.mubr.f32.gmra.mrb[0].mxu0 %v436
        %v526 = vpop.f32.mrb[0].mxu0
        %v527 = vadd.f32 %v458, %v526
        %v528 = vpop.f32.mrb[0].mxu0
        %529 = vdwg.mxu0
        %v530 = vmul.f32 %v527, 0.5
        %v531 = vmul.f32 %v527, 0.70710677
        %v532 = verf.f32.pop %v531
        %v533 = vadd.f32 %v532, 1.0
        %v534 = vmul.f32 %v530, %v533
        %v535 = vld [vmem:[#allocation8] sm:$0xff]
        %v536 = vld [vmem:[#allocation8 + $0x8] sm:$0xff]
        %v537 = vld [vmem:[#allocation8 + $0x10] sm:$0xff]
        %v538 = vld [vmem:[#allocation8 + $0x18] sm:$0xff]
        %v539 = vld [vmem:[#allocation8 + $0x20] sm:$0xff]
        %v540 = vld [vmem:[#allocation8 + $0x28] sm:$0xff]
        %v541 = vld [vmem:[#allocation8 + $0x30] sm:$0xff]
        %v542 = vld [vmem:[#allocation8 + $0x38] sm:$0xff]
        %v543 = vld [vmem:[#allocation8 + $0x40] sm:$0xff]
        %v544 = vld [vmem:[#allocation8 + $0x48] sm:$0xff]
        %v545 = vld [vmem:[#allocation8 + $0x50] sm:$0xff]
        %v546 = vld [vmem:[#allocation8 + $0x58] sm:$0xff]
        %v547 = vld [vmem:[#allocation8 + $0x60] sm:$0xff]
        %v548 = vld [vmem:[#allocation8 + $0x68] sm:$0xff]
        %v549 = vld [vmem:[#allocation8 + $0x70] sm:$0xff]
        %v550 = vld [vmem:[#allocation8 + $0x78] sm:$0xff]
        %v551 = vld [vmem:[%s6] sm:$0x1]
        %v553 = vlaneseq
        %v554 = vshrl.u32 %v553, 7
        %v555 = vsub.s32 0, %v554
        %v556 = vrot.slane %v551, %v555
        %558 = vmatprep.subr.mxu0 0.0
        %559 = vmatpush1.msra.mxu0 %v535
        %560 = vmatprep.subr.mxu0 0.0
        %561 = vmatpush1.msra.mxu0 %v536
        %562 = vmatprep.subr.mxu0 0.0
        %563 = vmatpush1.msra.mxu0 %v537
        %564 = vmatprep.subr.mxu0 0.0
        %565 = vmatpush1.msra.mxu0 %v538
        %566 = vmatprep.subr.mxu0 0.0
        %567 = vmatpush1.msra.mxu0 %v539
        %568 = vmatprep.subr.mxu0 0.0
        %569 = vmatpush1.msra.mxu0 %v540
        %570 = vmatprep.subr.mxu0 0.0
        %571 = vmatpush1.msra.mxu0 %v541
        %572 = vmatprep.subr.mxu0 0.0
        %573 = vmatpush1.msra.mxu0 %v542
        %574 = vmatprep.subr.mxu0 0.0
        %575 = vmatpush1.msra.mxu0 %v543
        %576 = vmatprep.subr.mxu0 0.0
        %577 = vmatpush1.msra.mxu0 %v544
        %578 = vmatprep.subr.mxu0 0.0
        %579 = vmatpush1.msra.mxu0 %v545
        %580 = vmatprep.subr.mxu0 0.0
        %581 = vmatpush1.msra.mxu0 %v546
        %582 = vmatprep.subr.mxu0 0.0
        %583 = vmatpush1.msra.mxu0 %v547
        %584 = vmatprep.subr.mxu0 0.0
        %585 = vmatpush1.msra.mxu0 %v548
        %586 = vmatprep.subr.mxu0 0.0
        %587 = vmatpush1.msra.mxu0 %v549
        %588 = vmatprep.subr.mxu0 0.0
        %589 = vmatpush1.msra.mxu0 %v550
        %590 = vmatprep.subr.mxu0 0.0
        %591 = vmatpush1.msra.mxu0 0.0
        %592 = vmatprep.subr.mxu0 0.0
        %593 = vmatpush1.msra.mxu0 0.0
        %594 = vmatprep.subr.mxu0 0.0
        %595 = vmatpush1.msra.mxu0 0.0
        %596 = vmatprep.subr.mxu0 0.0
        %597 = vmatpush1.msra.mxu0 0.0
        %598 = vmatprep.subr.mxu0 0.0
        %599 = vmatpush1.msra.mxu0 0.0
        %600 = vmatprep.subr.mxu0 0.0
        %601 = vmatpush1.msra.mxu0 0.0
        %602 = vmatprep.subr.mxu0 0.0
        %603 = vmatpush1.msra.mxu0 0.0
        %604 = vmatprep.subr.mxu0 0.0
        %605 = vmatpush1.msra.mxu0 0.0
        %606 = vmatprep.subr.mxu0 0.0
        %607 = vmatpush1.msra.mxu0 0.0
        %608 = vmatprep.subr.mxu0 0.0
        %609 = vmatpush1.msra.mxu0 0.0
        %610 = vmatprep.subr.mxu0 0.0
        %611 = vmatpush1.msra.mxu0 0.0
        %612 = vmatprep.subr.mxu0 0.0
        %613 = vmatpush1.msra.mxu0 0.0
        %614 = vmatprep.subr.mxu0 0.0
        %615 = vmatpush1.msra.mxu0 0.0
        %616 = vmatprep.subr.mxu0 0.0
        %617 = vmatpush1.msra.mxu0 0.0
        %618 = vmatprep.subr.mxu0 0.0
        %619 = vmatpush1.msra.mxu0 0.0
        %620 = vmatprep.subr.mxu0 0.0
        %621 = vmatpush1.msra.mxu0 0.0
        %622 = vmatprep.mubr.f32.mxu0 0.0
        %623 = vmatmul.mubr.f32.gmra.mrb[0].mxu0 %v534
        %v624 = vpop.f32.mrb[0].mxu0
        %v625 = vadd.f32 %v556, %v624
        %v626 = vpop.f32.mrb[0].mxu0
        %627 = vdwg.mxu0
        %628 = vst [vmem:[%s337] sm:$0xff] %v625
        %s629 = sand.u32 %s186, 1
        %s630 = scalar_lea.sflag [#allocation4], %s629
        %s631 = sand.u32 %s186, 1
        %s632 = smul.addr %s631, 8
        %s633 = scalar_lea.vmem [#allocation10], %s632
        // Predicated region
        $region65: #{tpu_custom_call.1} parent=47 // pred_check
          %p634 = pneg %p196
        $region66: #{tpu_custom_call.1} parent=47 // pred_check_branch
          %636 = sbr.rel (%p634) target = $region68
        $region67: #{tpu_custom_call.1} parent=47 // pred_region
          %s638 = ssub.s32 128, 128
          %639 = vsyncadd %s630, %s638
          %s640 = smul.addr %s26, 128
          %s641 = scalar_lea.hbm %s7, %s640
          %s643 = sshll.u32 %s633, 4
          %s644 = int_to_ptr.vmem [resolvable:$true] %s643
          %646 = dma.vmem_to_hbm [thread:$0]  %s644, 128, %s641, %s630
        $region68: #{tpu_custom_call.1} parent=47 // pred_fallthru
          _
      $region48: #{tpu_custom_call.1} parent=5 // pred_fallthru
        _
      %p647 = scmp.le.s32.totalorder 2, %s21
      // Predicated region
      $region69: #{tpu_custom_call.1} parent=5 // pred_check
        %p648 = pneg %p647
      $region70: #{tpu_custom_call.1} parent=5 // pred_check_branch
        %650 = sbr.rel (%p648) target = $region72
      $region71: #{tpu_custom_call.1} parent=5 // pred_region
        %s651 = ssub.s32 %s21, 2
        // Predicated region
        $region73: #{tpu_custom_call.1} parent=71 // pred_check
          %p652 = pneg %p202
        $region74: #{tpu_custom_call.1} parent=71 // pred_check_branch
          %654 = sbr.rel (%p652) target = $region76
        $region75: #{tpu_custom_call.1} parent=71 // pred_region
          %s655 = sand.u32 %s187, 1
          %s656 = scalar_lea.sflag [#allocation4], %s655
          %s657 = sand.u32 %s187, 1
          %s658 = smul.addr %s657, 8
          %s659 = scalar_lea.vmem [#allocation10], %s658
          %660 = dma.done %s656, 128
        $region76: #{tpu_custom_call.1} parent=71 // pred_fallthru
          _
      $region72: #{tpu_custom_call.1} parent=5 // pred_fallthru
        _
    $region6: #{tpu_custom_call.1} parent=1 // loop_footer
      %s25 = sadd.s32 1, %s21
    $region7: #{tpu_custom_call.1} parent=1 // loop_footer_branch
      %20 = sbr.rel target = $region3
    $region8: #{tpu_custom_call.1} parent=1 // loop_exit
      _
    %661 = vsyncpa [#allocation3], 1
    %s662 = scalar_lea.sflag [#allocation3], 1
    %663 = vsyncpa %s662, 1
    %664 = vsyncpa [#allocation6], 1
    %665 = vsyncpa [#allocation9], 1
    %666 = vsyncpa [#allocation4], 1
    %s667 = scalar_lea.sflag [#allocation4], 1
    %668 = vsyncpa %s667, 1

</llo_original>
